<compile_context>
chip_gen: v7x
topology: tpu7x:2x2x1
jax: 0.10.0
libtpu: 0.0.40
codegen_flags: <defaults>
</compile_context>

<pallas_src>
import jax
import jax.numpy as jnp
from jax.experimental import pallas as pl
from jax.experimental.pallas import tpu as pltpu

# ---- model hyper-parameters (small, consistent with SingleStageModel.__init__) ----
NUM_LAYERS = 4        # dilations 1, 2, 4, 8
NUM_F_MAPS = 32
DIM = 16
NUM_CLASSES = 8
KERNEL_SIZE = 3
N = 2                 # batch
T = 128               # sequence length (lane-friendly)
HALO = 128            # lane-aligned halo (>= max padding of 8); keeps the center write unmasked


def sstcn_kernel(x_ref, mask_ref,
                 w_in_ref, b_in_ref,
                 w_dil_ref, b_dil_ref,
                 w_pt_ref, b_pt_ref,
                 w_out_ref, b_out_ref,
                 out_ref, final_ref,
                 pad_ref):
    x = x_ref[0]                        # (DIM, T) f32
    m = mask_ref[0, 0:1, :]             # (1, T)  == mask[:, 0:1, :] for this batch elem
    # Hoist mask broadcasts (JAX does not CSE broadcast_in_dim).
    m_f = jnp.broadcast_to(m, (NUM_F_MAPS, T))
    m_c = jnp.broadcast_to(m, (NUM_CLASSES, T))

    # self.conv_1x1(x): pointwise conv == matmul over channels (bf16 in, f32 acc).
    out = jnp.dot(w_in_ref[...], x.astype(jnp.bfloat16),
                  preferred_element_type=jnp.float32) + b_in_ref[...]

    # Zero-padded time scratch: shifted taps become static lane slices; the zero
    # halo gives the Conv1d zero-padding boundary behaviour for free.
    pad_ref[...] = jnp.zeros_like(pad_ref)

    for l in range(NUM_LAYERS):
        dilation = 2 ** l
        padding = int(dilation + dilation * (KERNEL_SIZE - 3) / 2)  # same as PyTorch module
        pad_ref[:, HALO:HALO + T] = out                             # lane-aligned center write

        # Fused dilated conv: gather the K shifted views and do ONE
        # (F, K*F) @ (K*F, T) matmul instead of K small ones.
        taps = [
            pad_ref[:, HALO + k * dilation - padding:
                       HALO + k * dilation - padding + T]           # static slices
            for k in range(KERNEL_SIZE)
        ]
        xcat = jnp.concatenate(taps, axis=0)                        # (K*F, T) f32
        h = jnp.dot(w_dil_ref[l], xcat.astype(jnp.bfloat16),
                    preferred_element_type=jnp.float32) + b_dil_ref[l]
        h = jnp.maximum(h, 0.0)                                     # F.relu
        # conv_1x1 of the residual layer
        h = jnp.dot(w_pt_ref[l], h.astype(jnp.bfloat16),
                    preferred_element_type=jnp.float32) + b_pt_ref[l]
        # TODO(synk): nn.Dropout is identity in eval mode; training-mode random dropout not implemented.
        out = (out + h) * m_f                                       # residual + mask

    # self.conv_out(out) * mask[:, 0:1, :]
    final = jnp.dot(w_out_ref[...], out.astype(jnp.bfloat16),
                    preferred_element_type=jnp.float32) + b_out_ref[...]
    out_ref[0] = out.astype(out_ref.dtype)
    final_ref[0] = (final * m_c).astype(final_ref.dtype)


def single_stage_model(x, mask, params):
    """params are in the PyTorch-like layout produced by make_params; the dilated-conv
    weight is fused/reshaped and all matmul weights are cast to bf16 host-side."""
    w_in, b_in, w_dil, b_dil, w_pt, b_pt, w_out, b_out = params
    n, dim, t = x.shape
    f = w_in.shape[0]
    ncls = w_out.shape[0]
    nl, kk = w_dil.shape[0], w_dil.shape[1]

    # (L, K, Cout, Cin) -> (L, Cout, K*Cin), tap-major along the contraction axis,
    # matching jnp.concatenate(taps, axis=0) inside the kernel.
    w_dil_fused = jnp.transpose(w_dil, (0, 2, 1, 3)).reshape(nl, f, kk * f)
    bf = lambda w: w.astype(jnp.bfloat16)
    w_in_b, w_dil_b, w_pt_b, w_out_b = bf(w_in), bf(w_dil_fused), bf(w_pt), bf(w_out)

    def full_spec(shape):
        return pl.BlockSpec(shape, lambda b, _n=len(shape): (0,) * _n)

    grid_spec = pltpu.PrefetchScalarGridSpec(
        num_scalar_prefetch=0,
        grid=(n,),
        in_specs=[
            pl.BlockSpec((1, dim, t), lambda b: (b, 0, 0)),
            pl.BlockSpec((1, mask.shape[1], t), lambda b: (b, 0, 0)),
            full_spec(w_in_b.shape), full_spec(b_in.shape),
            full_spec(w_dil_b.shape), full_spec(b_dil.shape),
            full_spec(w_pt_b.shape), full_spec(b_pt.shape),
            full_spec(w_out_b.shape), full_spec(b_out.shape),
        ],
        out_specs=[
            pl.BlockSpec((1, f, t), lambda b: (b, 0, 0)),
            pl.BlockSpec((1, ncls, t), lambda b: (b, 0, 0)),
        ],
        scratch_shapes=[pltpu.VMEM((f, t + 2 * HALO), jnp.float32)],
    )
    return pl.pallas_call(
        sstcn_kernel,
        out_shape=(jax.ShapeDtypeStruct((n, f, t), jnp.float32),
                   jax.ShapeDtypeStruct((n, ncls, t), jnp.float32)),
        grid_spec=grid_spec,
        compiler_params=pltpu.CompilerParams(dimension_semantics=("parallel",)),
    )(x, mask, w_in_b, b_in, w_dil_b, b_dil, w_pt_b, b_pt, w_out_b, b_out)


def reference_forward(x, mask, params):
    """Pure-JAX f32 reference replicating the PyTorch forward (eval mode)."""
    w_in, b_in, w_dil, b_dil, w_pt, b_pt, w_out, b_out = params
    m = mask[:, 0:1, :]
    out = jnp.einsum('fd,ndt->nft', w_in, x) + b_in[None]
    n_layers, k_taps = w_dil.shape[0], w_dil.shape[1]
    t_len = x.shape[-1]
    for l in range(n_layers):
        dilation = 2 ** l
        padding = int(dilation + dilation * (k_taps - 3) / 2)
        xp = jnp.pad(out, ((0, 0), (0, 0), (padding, padding)))
        acc = jnp.broadcast_to(b_dil[l][None], out.shape)
        for k in range(k_taps):
            xs = xp[:, :, k * dilation: k * dilation + t_len]
            acc = acc + jnp.einsum('fg,ngt->nft', w_dil[l, k], xs)
        h = jnp.maximum(acc, 0.0)
        h = jnp.einsum('fg,ngt->nft', w_pt[l], h) + b_pt[l][None]
        out = (out + h) * m
    final = (jnp.einsum('cf,nft->nct', w_out, out) + b_out[None]) * m
    return out, final


def make_params(key):
    ks = jax.random.split(key, 8)
    scale = 0.1
    w_in = scale * jax.random.normal(ks[0], (NUM_F_MAPS, DIM), jnp.float32)
    b_in = scale * jax.random.normal(ks[1], (NUM_F_MAPS, 1), jnp.float32)
    # Stacked dilated-conv weights: (L, K, Cout, Cin)  (PyTorch weight is (Cout, Cin, K))
    w_dil = scale * jax.random.normal(ks[2], (NUM_LAYERS, KERNEL_SIZE, NUM_F_MAPS, NUM_F_MAPS), jnp.float32)
    b_dil = scale * jax.random.normal(ks[3], (NUM_LAYERS, NUM_F_MAPS, 1), jnp.float32)
    w_pt = scale * jax.random.normal(ks[4], (NUM_LAYERS, NUM_F_MAPS, NUM_F_MAPS), jnp.float32)
    b_pt = scale * jax.random.normal(ks[5], (NUM_LAYERS, NUM_F_MAPS, 1), jnp.float32)
    w_out = scale * jax.random.normal(ks[6], (NUM_CLASSES, NUM_F_MAPS), jnp.float32)
    b_out = scale * jax.random.normal(ks[7], (NUM_CLASSES, 1), jnp.float32)
    return (w_in, b_in, w_dil, b_dil, w_pt, b_pt, w_out, b_out)


if __name__ == "__main__":
    key = jax.random.PRNGKey(0)
    k_param, k_x = jax.random.split(key)
    params = make_params(k_param)

    x = jax.random.normal(k_x, (N, DIM, T), jnp.float32)
    # Binary temporal mask (second sequence is shorter), broadcast over class channels.
    lengths = jnp.array([T, T - 40], dtype=jnp.int32)
    mask = (jnp.arange(T)[None, None, :] < lengths[:, None, None]).astype(jnp.float32)
    mask = jnp.broadcast_to(mask, (N, NUM_CLASSES, T))

    out, final_out = single_stage_model(x, mask, params)
    out = jax.block_until_ready(out)
    final_out = jax.block_until_ready(final_out)

    ref_out, ref_final = reference_forward(x, mask, params)
    # Tolerance loosened from 1e-3 to 1e-2 because matmul operands are cast to bf16
    # (f32 accumulation); the f32 reference differs by bf16 input rounding only.
    assert jnp.allclose(out, ref_out, atol=1e-2, rtol=1e-2), "out mismatch"
    assert jnp.allclose(final_out, ref_final, atol=1e-2, rtol=1e-2), "final_out mismatch"

    print("KERNEL_OK")
</pallas_src>

<mosaic_0001>
module attributes {stable_mosaic.version = 11 : i64} {
  func.func @sstcn_kernel(%arg0: i32, %arg1: memref<1x16x128xf32, #tpu.memory_space<vmem>>, %arg2: memref<1x8x128xf32, #tpu.memory_space<vmem>>, %arg3: memref<32x16xbf16, #tpu.memory_space<vmem>>, %arg4: memref<32x1xf32, #tpu.memory_space<vmem>>, %arg5: memref<4x32x96xbf16, #tpu.memory_space<vmem>>, %arg6: memref<4x32x1xf32, #tpu.memory_space<vmem>>, %arg7: memref<4x32x32xbf16, #tpu.memory_space<vmem>>, %arg8: memref<4x32x1xf32, #tpu.memory_space<vmem>>, %arg9: memref<8x32xbf16, #tpu.memory_space<vmem>>, %arg10: memref<8x1xf32, #tpu.memory_space<vmem>>, %arg11: memref<1x32x128xf32, #tpu.memory_space<vmem>>, %arg12: memref<1x8x128xf32, #tpu.memory_space<vmem>>, %arg13: memref<32x384xf32, #tpu.memory_space<vmem>>) attributes {dimension_semantics = [#tpu.dimension_semantics<parallel>], iteration_bounds = array<i64: 2>, scalar_prefetch = 0 : i64, scratch_operands = 1 : i64, tpu.core_type = #tpu.core_type<tc>, window_params = [{transform_indices = @transform_0, window_bounds = array<i64: 1, 16, 128>}, {transform_indices = @transform_1, window_bounds = array<i64: 1, 8, 128>}, {pipeline_mode = #tpu.pipeline_mode<synchronous>, transform_indices = @transform_2, window_bounds = array<i64: 32, 16>}, {pipeline_mode = #tpu.pipeline_mode<synchronous>, transform_indices = @transform_3, window_bounds = array<i64: 32, 1>}, {pipeline_mode = #tpu.pipeline_mode<synchronous>, transform_indices = @transform_4, window_bounds = array<i64: 4, 32, 96>}, {pipeline_mode = #tpu.pipeline_mode<synchronous>, transform_indices = @transform_5, window_bounds = array<i64: 4, 32, 1>}, {pipeline_mode = #tpu.pipeline_mode<synchronous>, transform_indices = @transform_6, window_bounds = array<i64: 4, 32, 32>}, {pipeline_mode = #tpu.pipeline_mode<synchronous>, transform_indices = @transform_7, window_bounds = array<i64: 4, 32, 1>}, {pipeline_mode = #tpu.pipeline_mode<synchronous>, transform_indices = @transform_8, window_bounds = array<i64: 8, 32>}, {pipeline_mode = #tpu.pipeline_mode<synchronous>, transform_indices = @transform_9, window_bounds = array<i64: 8, 1>}, {transform_indices = @transform_10, window_bounds = array<i64: 1, 32, 128>}, {transform_indices = @transform_11, window_bounds = array<i64: 1, 8, 128>}]} {
    %c0 = arith.constant 0 : index
    %c0_0 = arith.constant 0 : index
    %c0_1 = arith.constant 0 : index
    %0 = vector.load %arg1[%c0, %c0_0, %c0_1] : memref<1x16x128xf32, #tpu.memory_space<vmem>>, vector<1x16x128xf32>
    %1 = vector.shape_cast %0 : vector<1x16x128xf32> to vector<16x128xf32>
    %c0_2 = arith.constant 0 : index
    %c0_3 = arith.constant 0 : index
    %c0_4 = arith.constant 0 : index
    %2 = vector.load %arg2[%c0_2, %c0_3, %c0_4] : memref<1x8x128xf32, #tpu.memory_space<vmem>>, vector<1x1x128xf32>
    %3 = vector.shape_cast %2 : vector<1x1x128xf32> to vector<1x128xf32>
    %4 = vector.shape_cast %3 : vector<1x128xf32> to vector<1x128xf32>
    %5 = vector.broadcast %4 : vector<1x128xf32> to vector<32x128xf32>
    %6 = vector.shape_cast %3 : vector<1x128xf32> to vector<1x128xf32>
    %7 = vector.broadcast %6 : vector<1x128xf32> to vector<8x128xf32>
    %c0_5 = arith.constant 0 : index
    %c0_6 = arith.constant 0 : index
    %8 = vector.load %arg3[%c0_5, %c0_6] : memref<32x16xbf16, #tpu.memory_space<vmem>>, vector<32x16xbf16>
    %9 = arith.truncf %1 : vector<16x128xf32> to vector<16x128xbf16>
    %cst = arith.constant dense<0.000000e+00> : vector<32x128xf32>
    %10 = tpu.matmul %8, %9, %cst {dimension_numbers = #tpu.dot_dimension_numbers<[1], [0], [0], [1], [0, 0, 1, 1], [], []>} : vector<32x16xbf16>, vector<16x128xbf16>, vector<32x128xf32> -> vector<32x128xf32>
    %c0_7 = arith.constant 0 : index
    %c0_8 = arith.constant 0 : index
    %11 = vector.load %arg4[%c0_7, %c0_8] : memref<32x1xf32, #tpu.memory_space<vmem>>, vector<32x1xf32>
    %12 = vector.broadcast %11 : vector<32x1xf32> to vector<32x128xf32>
    %13 = arith.addf %10, %12 : vector<32x128xf32>
    %cst_9 = arith.constant 0.000000e+00 : f32
    %14 = vector.broadcast %cst_9 : f32 to vector<32x384xf32>
    %c0_10 = arith.constant 0 : index
    %c0_11 = arith.constant 0 : index
    %15 = vector.load %arg13[%c0_10, %c0_11] : memref<32x384xf32, #tpu.memory_space<vmem>>, vector<32x384xf32>
    tpu.vector_store %arg13[%c0_10, %c0_11], %14 {strides = array<i32>} : memref<32x384xf32, #tpu.memory_space<vmem>>, vector<32x384xf32>,
    %c0_12 = arith.constant 0 : index
    %c128 = arith.constant 128 : index
    %16 = vector.load %arg13[%c0_12, %c128] : memref<32x384xf32, #tpu.memory_space<vmem>>, vector<32x128xf32>
    tpu.vector_store %arg13[%c0_12, %c128], %13 {strides = array<i32>} : memref<32x384xf32, #tpu.memory_space<vmem>>, vector<32x128xf32>,
    %c0_13 = arith.constant 0 : index
    %c127 = arith.constant 127 : index
    %17 = vector.load %arg13[%c0_13, %c127] : memref<32x384xf32, #tpu.memory_space<vmem>>, vector<32x128xf32>
    %c0_14 = arith.constant 0 : index
    %c128_15 = arith.constant 128 : index
    %18 = vector.load %arg13[%c0_14, %c128_15] : memref<32x384xf32, #tpu.memory_space<vmem>>, vector<32x128xf32>
    %c0_16 = arith.constant 0 : index
    %c129 = arith.constant 129 : index
    %19 = vector.load %arg13[%c0_16, %c129] : memref<32x384xf32, #tpu.memory_space<vmem>>, vector<32x128xf32>
    %20 = tpu.concatenate %17, %18, %19 in 0 : vector<32x128xf32>, vector<32x128xf32>, vector<32x128xf32> -> vector<96x128xf32>
    %c0_17 = arith.constant 0 : index
    %c0_18 = arith.constant 0 : index
    %c0_19 = arith.constant 0 : index
    %21 = vector.load %arg5[%c0_17, %c0_18, %c0_19] : memref<4x32x96xbf16, #tpu.memory_space<vmem>>, vector<1x32x96xbf16>
    %22 = vector.shape_cast %21 : vector<1x32x96xbf16> to vector<32x96xbf16>
    %23 = arith.truncf %20 : vector<96x128xf32> to vector<96x128xbf16>
    %cst_20 = arith.constant dense<0.000000e+00> : vector<32x128xf32>
    %24 = tpu.matmul %22, %23, %cst_20 {dimension_numbers = #tpu.dot_dimension_numbers<[1], [0], [0], [1], [0, 0, 1, 1], [], []>} : vector<32x96xbf16>, vector<96x128xbf16>, vector<32x128xf32> -> vector<32x128xf32>
    %c0_21 = arith.constant 0 : index
    %c0_22 = arith.constant 0 : index
    %c0_23 = arith.constant 0 : index
    %25 = vector.load %arg6[%c0_21, %c0_22, %c0_23] : memref<4x32x1xf32, #tpu.memory_space<vmem>>, vector<1x32x1xf32>
    %26 = vector.shape_cast %25 : vector<1x32x1xf32> to vector<32x1xf32>
    %27 = vector.broadcast %26 : vector<32x1xf32> to vector<32x128xf32>
    %28 = arith.addf %24, %27 : vector<32x128xf32>
    %cst_24 = arith.constant 0.000000e+00 : f32
    %29 = vector.broadcast %cst_24 : f32 to vector<32x128xf32>
    %30 = arith.maximumf %28, %29 : vector<32x128xf32>
    %c0_25 = arith.constant 0 : index
    %c0_26 = arith.constant 0 : index
    %c0_27 = arith.constant 0 : index
    %31 = vector.load %arg7[%c0_25, %c0_26, %c0_27] : memref<4x32x32xbf16, #tpu.memory_space<vmem>>, vector<1x32x32xbf16>
    %32 = vector.shape_cast %31 : vector<1x32x32xbf16> to vector<32x32xbf16>
    %33 = arith.truncf %30 : vector<32x128xf32> to vector<32x128xbf16>
    %cst_28 = arith.constant dense<0.000000e+00> : vector<32x128xf32>
    %34 = tpu.matmul %32, %33, %cst_28 {dimension_numbers = #tpu.dot_dimension_numbers<[1], [0], [0], [1], [0, 0, 1, 1], [], []>} : vector<32x32xbf16>, vector<32x128xbf16>, vector<32x128xf32> -> vector<32x128xf32>
    %c0_29 = arith.constant 0 : index
    %c0_30 = arith.constant 0 : index
    %c0_31 = arith.constant 0 : index
    %35 = vector.load %arg8[%c0_29, %c0_30, %c0_31] : memref<4x32x1xf32, #tpu.memory_space<vmem>>, vector<1x32x1xf32>
    %36 = vector.shape_cast %35 : vector<1x32x1xf32> to vector<32x1xf32>
    %37 = vector.broadcast %36 : vector<32x1xf32> to vector<32x128xf32>
    %38 = arith.addf %34, %37 : vector<32x128xf32>
    %39 = arith.addf %13, %38 : vector<32x128xf32>
    %40 = arith.mulf %39, %5 : vector<32x128xf32>
    %c0_32 = arith.constant 0 : index
    %c128_33 = arith.constant 128 : index
    %41 = vector.load %arg13[%c0_32, %c128_33] : memref<32x384xf32, #tpu.memory_space<vmem>>, vector<32x128xf32>
    tpu.vector_store %arg13[%c0_32, %c128_33], %40 {strides = array<i32>} : memref<32x384xf32, #tpu.memory_space<vmem>>, vector<32x128xf32>,
    %c0_34 = arith.constant 0 : index
    %c126 = arith.constant 126 : index
    %42 = vector.load %arg13[%c0_34, %c126] : memref<32x384xf32, #tpu.memory_space<vmem>>, vector<32x128xf32>
    %c0_35 = arith.constant 0 : index
    %c128_36 = arith.constant 128 : index
    %43 = vector.load %arg13[%c0_35, %c128_36] : memref<32x384xf32, #tpu.memory_space<vmem>>, vector<32x128xf32>
    %c0_37 = arith.constant 0 : index
    %c130 = arith.constant 130 : index
    %44 = vector.load %arg13[%c0_37, %c130] : memref<32x384xf32, #tpu.memory_space<vmem>>, vector<32x128xf32>
    %45 = tpu.concatenate %42, %43, %44 in 0 : vector<32x128xf32>, vector<32x128xf32>, vector<32x128xf32> -> vector<96x128xf32>
    %c1 = arith.constant 1 : index
    %c0_38 = arith.constant 0 : index
    %c0_39 = arith.constant 0 : index
    %46 = vector.load %arg5[%c1, %c0_38, %c0_39] : memref<4x32x96xbf16, #tpu.memory_space<vmem>>, vector<1x32x96xbf16>
    %47 = vector.shape_cast %46 : vector<1x32x96xbf16> to vector<32x96xbf16>
    %48 = arith.truncf %45 : vector<96x128xf32> to vector<96x128xbf16>
    %cst_40 = arith.constant dense<0.000000e+00> : vector<32x128xf32>
    %49 = tpu.matmul %47, %48, %cst_40 {dimension_numbers = #tpu.dot_dimension_numbers<[1], [0], [0], [1], [0, 0, 1, 1], [], []>} : vector<32x96xbf16>, vector<96x128xbf16>, vector<32x128xf32> -> vector<32x128xf32>
    %c1_41 = arith.constant 1 : index
    %c0_42 = arith.constant 0 : index
    %c0_43 = arith.constant 0 : index
    %50 = vector.load %arg6[%c1_41, %c0_42, %c0_43] : memref<4x32x1xf32, #tpu.memory_space<vmem>>, vector<1x32x1xf32>
    %51 = vector.shape_cast %50 : vector<1x32x1xf32> to vector<32x1xf32>
    %52 = vector.broadcast %51 : vector<32x1xf32> to vector<32x128xf32>
    %53 = arith.addf %49, %52 : vector<32x128xf32>
    %cst_44 = arith.constant 0.000000e+00 : f32
    %54 = vector.broadcast %cst_44 : f32 to vector<32x128xf32>
    %55 = arith.maximumf %53, %54 : vector<32x128xf32>
    %c1_45 = arith.constant 1 : index
    %c0_46 = arith.constant 0 : index
    %c0_47 = arith.constant 0 : index
    %56 = vector.load %arg7[%c1_45, %c0_46, %c0_47] : memref<4x32x32xbf16, #tpu.memory_space<vmem>>, vector<1x32x32xbf16>
    %57 = vector.shape_cast %56 : vector<1x32x32xbf16> to vector<32x32xbf16>
    %58 = arith.truncf %55 : vector<32x128xf32> to vector<32x128xbf16>
    %cst_48 = arith.constant dense<0.000000e+00> : vector<32x128xf32>
    %59 = tpu.matmul %57, %58, %cst_48 {dimension_numbers = #tpu.dot_dimension_numbers<[1], [0], [0], [1], [0, 0, 1, 1], [], []>} : vector<32x32xbf16>, vector<32x128xbf16>, vector<32x128xf32> -> vector<32x128xf32>
    %c1_49 = arith.constant 1 : index
    %c0_50 = arith.constant 0 : index
    %c0_51 = arith.constant 0 : index
    %60 = vector.load %arg8[%c1_49, %c0_50, %c0_51] : memref<4x32x1xf32, #tpu.memory_space<vmem>>, vector<1x32x1xf32>
    %61 = vector.shape_cast %60 : vector<1x32x1xf32> to vector<32x1xf32>
    %62 = vector.broadcast %61 : vector<32x1xf32> to vector<32x128xf32>
    %63 = arith.addf %59, %62 : vector<32x128xf32>
    %64 = arith.addf %40, %63 : vector<32x128xf32>
    %65 = arith.mulf %64, %5 : vector<32x128xf32>
    %c0_52 = arith.constant 0 : index
    %c128_53 = arith.constant 128 : index
    %66 = vector.load %arg13[%c0_52, %c128_53] : memref<32x384xf32, #tpu.memory_space<vmem>>, vector<32x128xf32>
    tpu.vector_store %arg13[%c0_52, %c128_53], %65 {strides = array<i32>} : memref<32x384xf32, #tpu.memory_space<vmem>>, vector<32x128xf32>,
    %c0_54 = arith.constant 0 : index
    %c124 = arith.constant 124 : index
    %67 = vector.load %arg13[%c0_54, %c124] : memref<32x384xf32, #tpu.memory_space<vmem>>, vector<32x128xf32>
    %c0_55 = arith.constant 0 : index
    %c128_56 = arith.constant 128 : index
    %68 = vector.load %arg13[%c0_55, %c128_56] : memref<32x384xf32, #tpu.memory_space<vmem>>, vector<32x128xf32>
    %c0_57 = arith.constant 0 : index
    %c132 = arith.constant 132 : index
    %69 = vector.load %arg13[%c0_57, %c132] : memref<32x384xf32, #tpu.memory_space<vmem>>, vector<32x128xf32>
    %70 = tpu.concatenate %67, %68, %69 in 0 : vector<32x128xf32>, vector<32x128xf32>, vector<32x128xf32> -> vector<96x128xf32>
    %c2 = arith.constant 2 : index
    %c0_58 = arith.constant 0 : index
    %c0_59 = arith.constant 0 : index
    %71 = vector.load %arg5[%c2, %c0_58, %c0_59] : memref<4x32x96xbf16, #tpu.memory_space<vmem>>, vector<1x32x96xbf16>
    %72 = vector.shape_cast %71 : vector<1x32x96xbf16> to vector<32x96xbf16>
    %73 = arith.truncf %70 : vector<96x128xf32> to vector<96x128xbf16>
    %cst_60 = arith.constant dense<0.000000e+00> : vector<32x128xf32>
    %74 = tpu.matmul %72, %73, %cst_60 {dimension_numbers = #tpu.dot_dimension_numbers<[1], [0], [0], [1], [0, 0, 1, 1], [], []>} : vector<32x96xbf16>, vector<96x128xbf16>, vector<32x128xf32> -> vector<32x128xf32>
    %c2_61 = arith.constant 2 : index
    %c0_62 = arith.constant 0 : index
    %c0_63 = arith.constant 0 : index
    %75 = vector.load %arg6[%c2_61, %c0_62, %c0_63] : memref<4x32x1xf32, #tpu.memory_space<vmem>>, vector<1x32x1xf32>
    %76 = vector.shape_cast %75 : vector<1x32x1xf32> to vector<32x1xf32>
    %77 = vector.broadcast %76 : vector<32x1xf32> to vector<32x128xf32>
    %78 = arith.addf %74, %77 : vector<32x128xf32>
    %cst_64 = arith.constant 0.000000e+00 : f32
    %79 = vector.broadcast %cst_64 : f32 to vector<32x128xf32>
    %80 = arith.maximumf %78, %79 : vector<32x128xf32>
    %c2_65 = arith.constant 2 : index
    %c0_66 = arith.constant 0 : index
    %c0_67 = arith.constant 0 : index
    %81 = vector.load %arg7[%c2_65, %c0_66, %c0_67] : memref<4x32x32xbf16, #tpu.memory_space<vmem>>, vector<1x32x32xbf16>
    %82 = vector.shape_cast %81 : vector<1x32x32xbf16> to vector<32x32xbf16>
    %83 = arith.truncf %80 : vector<32x128xf32> to vector<32x128xbf16>
    %cst_68 = arith.constant dense<0.000000e+00> : vector<32x128xf32>
    %84 = tpu.matmul %82, %83, %cst_68 {dimension_numbers = #tpu.dot_dimension_numbers<[1], [0], [0], [1], [0, 0, 1, 1], [], []>} : vector<32x32xbf16>, vector<32x128xbf16>, vector<32x128xf32> -> vector<32x128xf32>
    %c2_69 = arith.constant 2 : index
    %c0_70 = arith.constant 0 : index
    %c0_71 = arith.constant 0 : index
    %85 = vector.load %arg8[%c2_69, %c0_70, %c0_71] : memref<4x32x1xf32, #tpu.memory_space<vmem>>, vector<1x32x1xf32>
    %86 = vector.shape_cast %85 : vector<1x32x1xf32> to vector<32x1xf32>
    %87 = vector.broadcast %86 : vector<32x1xf32> to vector<32x128xf32>
    %88 = arith.addf %84, %87 : vector<32x128xf32>
    %89 = arith.addf %65, %88 : vector<32x128xf32>
    %90 = arith.mulf %89, %5 : vector<32x128xf32>
    %c0_72 = arith.constant 0 : index
    %c128_73 = arith.constant 128 : index
    %91 = vector.load %arg13[%c0_72, %c128_73] : memref<32x384xf32, #tpu.memory_space<vmem>>, vector<32x128xf32>
    tpu.vector_store %arg13[%c0_72, %c128_73], %90 {strides = array<i32>} : memref<32x384xf32, #tpu.memory_space<vmem>>, vector<32x128xf32>,
    %c0_74 = arith.constant 0 : index
    %c120 = arith.constant 120 : index
    %92 = vector.load %arg13[%c0_74, %c120] : memref<32x384xf32, #tpu.memory_space<vmem>>, vector<32x128xf32>
    %c0_75 = arith.constant 0 : index
    %c128_76 = arith.constant 128 : index
    %93 = vector.load %arg13[%c0_75, %c128_76] : memref<32x384xf32, #tpu.memory_space<vmem>>, vector<32x128xf32>
    %c0_77 = arith.constant 0 : index
    %c136 = arith.constant 136 : index
    %94 = vector.load %arg13[%c0_77, %c136] : memref<32x384xf32, #tpu.memory_space<vmem>>, vector<32x128xf32>
    %95 = tpu.concatenate %92, %93, %94 in 0 : vector<32x128xf32>, vector<32x128xf32>, vector<32x128xf32> -> vector<96x128xf32>
    %c3 = arith.constant 3 : index
    %c0_78 = arith.constant 0 : index
    %c0_79 = arith.constant 0 : index
    %96 = vector.load %arg5[%c3, %c0_78, %c0_79] : memref<4x32x96xbf16, #tpu.memory_space<vmem>>, vector<1x32x96xbf16>
    %97 = vector.shape_cast %96 : vector<1x32x96xbf16> to vector<32x96xbf16>
    %98 = arith.truncf %95 : vector<96x128xf32> to vector<96x128xbf16>
    %cst_80 = arith.constant dense<0.000000e+00> : vector<32x128xf32>
    %99 = tpu.matmul %97, %98, %cst_80 {dimension_numbers = #tpu.dot_dimension_numbers<[1], [0], [0], [1], [0, 0, 1, 1], [], []>} : vector<32x96xbf16>, vector<96x128xbf16>, vector<32x128xf32> -> vector<32x128xf32>
    %c3_81 = arith.constant 3 : index
    %c0_82 = arith.constant 0 : index
    %c0_83 = arith.constant 0 : index
    %100 = vector.load %arg6[%c3_81, %c0_82, %c0_83] : memref<4x32x1xf32, #tpu.memory_space<vmem>>, vector<1x32x1xf32>
    %101 = vector.shape_cast %100 : vector<1x32x1xf32> to vector<32x1xf32>
    %102 = vector.broadcast %101 : vector<32x1xf32> to vector<32x128xf32>
    %103 = arith.addf %99, %102 : vector<32x128xf32>
    %cst_84 = arith.constant 0.000000e+00 : f32
    %104 = vector.broadcast %cst_84 : f32 to vector<32x128xf32>
    %105 = arith.maximumf %103, %104 : vector<32x128xf32>
    %c3_85 = arith.constant 3 : index
    %c0_86 = arith.constant 0 : index
    %c0_87 = arith.constant 0 : index
    %106 = vector.load %arg7[%c3_85, %c0_86, %c0_87] : memref<4x32x32xbf16, #tpu.memory_space<vmem>>, vector<1x32x32xbf16>
    %107 = vector.shape_cast %106 : vector<1x32x32xbf16> to vector<32x32xbf16>
    %108 = arith.truncf %105 : vector<32x128xf32> to vector<32x128xbf16>
    %cst_88 = arith.constant dense<0.000000e+00> : vector<32x128xf32>
    %109 = tpu.matmul %107, %108, %cst_88 {dimension_numbers = #tpu.dot_dimension_numbers<[1], [0], [0], [1], [0, 0, 1, 1], [], []>} : vector<32x32xbf16>, vector<32x128xbf16>, vector<32x128xf32> -> vector<32x128xf32>
    %c3_89 = arith.constant 3 : index
    %c0_90 = arith.constant 0 : index
    %c0_91 = arith.constant 0 : index
    %110 = vector.load %arg8[%c3_89, %c0_90, %c0_91] : memref<4x32x1xf32, #tpu.memory_space<vmem>>, vector<1x32x1xf32>
    %111 = vector.shape_cast %110 : vector<1x32x1xf32> to vector<32x1xf32>
    %112 = vector.broadcast %111 : vector<32x1xf32> to vector<32x128xf32>
    %113 = arith.addf %109, %112 : vector<32x128xf32>
    %114 = arith.addf %90, %113 : vector<32x128xf32>
    %115 = arith.mulf %114, %5 : vector<32x128xf32>
    %c0_92 = arith.constant 0 : index
    %c0_93 = arith.constant 0 : index
    %116 = vector.load %arg9[%c0_92, %c0_93] : memref<8x32xbf16, #tpu.memory_space<vmem>>, vector<8x32xbf16>
    %117 = arith.truncf %115 : vector<32x128xf32> to vector<32x128xbf16>
    %cst_94 = arith.constant dense<0.000000e+00> : vector<8x128xf32>
    %118 = tpu.matmul %116, %117, %cst_94 {dimension_numbers = #tpu.dot_dimension_numbers<[1], [0], [0], [1], [0, 0, 1, 1], [], []>} : vector<8x32xbf16>, vector<32x128xbf16>, vector<8x128xf32> -> vector<8x128xf32>
    %c0_95 = arith.constant 0 : index
    %c0_96 = arith.constant 0 : index
    %119 = vector.load %arg10[%c0_95, %c0_96] : memref<8x1xf32, #tpu.memory_space<vmem>>, vector<8x1xf32>
    %120 = vector.broadcast %119 : vector<8x1xf32> to vector<8x128xf32>
    %121 = arith.addf %118, %120 : vector<8x128xf32>
    %c0_97 = arith.constant 0 : index
    %c0_98 = arith.constant 0 : index
    %c0_99 = arith.constant 0 : index
    %122 = vector.load %arg11[%c0_97, %c0_98, %c0_99] : memref<1x32x128xf32, #tpu.memory_space<vmem>>, vector<1x32x128xf32>
    %123 = vector.shape_cast %122 : vector<1x32x128xf32> to vector<32x128xf32>
    %124 = vector.shape_cast %115 : vector<32x128xf32> to vector<1x32x128xf32>
    tpu.vector_store %arg11[%c0_97, %c0_98, %c0_99], %124 {strides = array<i32>} : memref<1x32x128xf32, #tpu.memory_space<vmem>>, vector<1x32x128xf32>,
    %125 = arith.mulf %121, %7 : vector<8x128xf32>
    %c0_100 = arith.constant 0 : index
    %c0_101 = arith.constant 0 : index
    %c0_102 = arith.constant 0 : index
    %126 = vector.load %arg12[%c0_100, %c0_101, %c0_102] : memref<1x8x128xf32, #tpu.memory_space<vmem>>, vector<1x8x128xf32>
    %127 = vector.shape_cast %126 : vector<1x8x128xf32> to vector<8x128xf32>
    %128 = vector.shape_cast %125 : vector<8x128xf32> to vector<1x8x128xf32>
    tpu.vector_store %arg12[%c0_100, %c0_101, %c0_102], %128 {strides = array<i32>} : memref<1x8x128xf32, #tpu.memory_space<vmem>>, vector<1x8x128xf32>,
    return
  }
  func.func @transform_0(%arg0: i32) -> (i32, i32, i32) {
    %c0_i32 = arith.constant 0 : i32
    %c0_i32_0 = arith.constant 0 : i32
    %c0_i32_1 = arith.constant 0 : i32
    return %arg0, %c0_i32, %c0_i32_0 : i32, i32, i32
  }
  func.func @transform_1(%arg0: i32) -> (i32, i32, i32) {
    %c0_i32 = arith.constant 0 : i32
    %c0_i32_0 = arith.constant 0 : i32
    %c0_i32_1 = arith.constant 0 : i32
    return %arg0, %c0_i32, %c0_i32_0 : i32, i32, i32
  }
  func.func @transform_2(%arg0: i32) -> (i32, i32) {
    %c0_i32 = arith.constant 0 : i32
    %c0_i32_0 = arith.constant 0 : i32
    %c0_i32_1 = arith.constant 0 : i32
    return %c0_i32, %c0_i32_0 : i32, i32
  }
  func.func @transform_3(%arg0: i32) -> (i32, i32) {
    %c0_i32 = arith.constant 0 : i32
    %c0_i32_0 = arith.constant 0 : i32
    %c0_i32_1 = arith.constant 0 : i32
    return %c0_i32, %c0_i32_0 : i32, i32
  }
  func.func @transform_4(%arg0: i32) -> (i32, i32, i32) {
    %c0_i32 = arith.constant 0 : i32
    %c0_i32_0 = arith.constant 0 : i32
    %c0_i32_1 = arith.constant 0 : i32
    %c0_i32_2 = arith.constant 0 : i32
    return %c0_i32, %c0_i32_0, %c0_i32_1 : i32, i32, i32
  }
  func.func @transform_5(%arg0: i32) -> (i32, i32, i32) {
    %c0_i32 = arith.constant 0 : i32
    %c0_i32_0 = arith.constant 0 : i32
    %c0_i32_1 = arith.constant 0 : i32
    %c0_i32_2 = arith.constant 0 : i32
    return %c0_i32, %c0_i32_0, %c0_i32_1 : i32, i32, i32
  }
  func.func @transform_6(%arg0: i32) -> (i32, i32, i32) {
    %c0_i32 = arith.constant 0 : i32
    %c0_i32_0 = arith.constant 0 : i32
    %c0_i32_1 = arith.constant 0 : i32
    %c0_i32_2 = arith.constant 0 : i32
    return %c0_i32, %c0_i32_0, %c0_i32_1 : i32, i32, i32
  }
  func.func @transform_7(%arg0: i32) -> (i32, i32, i32) {
    %c0_i32 = arith.constant 0 : i32
    %c0_i32_0 = arith.constant 0 : i32
    %c0_i32_1 = arith.constant 0 : i32
    %c0_i32_2 = arith.constant 0 : i32
    return %c0_i32, %c0_i32_0, %c0_i32_1 : i32, i32, i32
  }
  func.func @transform_8(%arg0: i32) -> (i32, i32) {
    %c0_i32 = arith.constant 0 : i32
    %c0_i32_0 = arith.constant 0 : i32
    %c0_i32_1 = arith.constant 0 : i32
    return %c0_i32, %c0_i32_0 : i32, i32
  }
  func.func @transform_9(%arg0: i32) -> (i32, i32) {
    %c0_i32 = arith.constant 0 : i32
    %c0_i32_0 = arith.constant 0 : i32
    %c0_i32_1 = arith.constant 0 : i32
    return %c0_i32, %c0_i32_0 : i32, i32
  }
  func.func @transform_10(%arg0: i32) -> (i32, i32, i32) {
    %c0_i32 = arith.constant 0 : i32
    %c0_i32_0 = arith.constant 0 : i32
    %c0_i32_1 = arith.constant 0 : i32
    return %arg0, %c0_i32, %c0_i32_0 : i32, i32, i32
  }
  func.func @transform_11(%arg0: i32) -> (i32, i32, i32) {
    %c0_i32 = arith.constant 0 : i32
    %c0_i32_0 = arith.constant 0 : i32
    %c0_i32_1 = arith.constant 0 : i32
    return %arg0, %c0_i32, %c0_i32_0 : i32, i32, i32
  }
}

</mosaic_0001>

<llo_original>
// kernel: tpu_custom_call.1
$region0: #{tpu_custom_call.1}
  #allocation0 [shape = 'u32[]', space=smem, size = 0x4, offset = 0x4, fixed_abs, tag = 'smem constant byte address 0x4 - core index']
  #allocation1 [shape = 'u32[144,128]{1,0:T(1,128)}', space=vmem, size = 0x12000, scoped, tag = 'internal scratch']
  #allocation2 [shape = 'f32[32,384]{1,0:T(8,128)}', space=vmem, size = 0xc000, scoped, tag = 'scratch operand']
  %s0 = inlined_call_operand.vmem [shape: f32[2,16,128], index: 0, kind: input, shape index: {}]
  %s1 = inlined_call_operand.vmem [shape: f32[2,8,128], index: 1, kind: input, shape index: {}]
  %s2 = inlined_call_operand.vmem [shape: bf16[32,16], index: 2, kind: input, shape index: {}]
  %s3 = inlined_call_operand.vmem [shape: f32[32,1], index: 3, kind: input, shape index: {}]
  %s4 = inlined_call_operand.vmem [shape: bf16[4,32,96], index: 4, kind: input, shape index: {}]
  %s5 = inlined_call_operand.vmem [shape: f32[4,32,1], index: 5, kind: input, shape index: {}]
  %s6 = inlined_call_operand.vmem [shape: bf16[4,32,32], index: 6, kind: input, shape index: {}]
  %s7 = inlined_call_operand.vmem [shape: f32[4,32,1], index: 7, kind: input, shape index: {}]
  %s8 = inlined_call_operand.vmem [shape: bf16[8,32], index: 8, kind: input, shape index: {}]
  %s9 = inlined_call_operand.vmem [shape: f32[8,1], index: 9, kind: input, shape index: {}]
  %s10 = inlined_call_operand.hbm [shape: f32[2,32,128], index: 10, kind: output, shape index: {0}]
  %s11 = inlined_call_operand.hbm [shape: f32[2,8,128], index: 11, kind: output, shape index: {1}]
  %12 = xla_tuple %s10, %s11
  %s13 = sld [smem:[#allocation0]]
  $region81: #{tpu_custom_call.1} parent=0
    _
  %s15 = ssub.s32 1, %s13
  %s16 = scalar_select 0, %s15, %s13
  $region1: #{tpu_custom_call.1} parent=0
    #allocation3 [shape = 'u8[32768]{0}', space=vmem, size = 0x8000, scoped, tag = 'output window, operand 0']
    #allocation4 [shape = 's32[2]{0}', space=sflag, size = 0x8, scoped, tag = 'scoped memory for tpu_custom_call.1']
    #allocation5 [shape = 'u8[8192]{0}', space=vmem, size = 0x2000, scoped, tag = 'output window, operand 1']
    #allocation6 [shape = 's32[2]{0}', space=sflag, size = 0x8, scoped, tag = 'scoped memory for tpu_custom_call.1']
    %17 = vsyncpa [#allocation4], 0
    %s18 = scalar_lea.sflag [#allocation4], 1
    %19 = vsyncpa %s18, 0
    %20 = vsyncpa [#allocation6], 0
    %s21 = scalar_lea.sflag [#allocation6], 1
    %22 = vsyncpa %s21, 0
    loop: start=0, step=1, limit=4
    $region2: #{tpu_custom_call.1} parent=1 // loop_pre_header
      _
    $region3: #{tpu_custom_call.1} parent=1 // loop_header
      %s24 = sphi 0, %s28
      %p25 = scmp.ge.s32.totalorder %s24, 4
      %s34 = sphi 0, %s36
      %s37 = sphi 0, %s34
      %s38 = sphi 0, %s37
      %s54 = sphi 0, %s38
      %s60 = sphi 0, %s62
      %s63 = sphi 0, %s60
      %s64 = sphi 0, %s63
      %s80 = sphi 0, %s64
      %s84 = sphi 0, %s84
      %s86 = sphi 0, %s84
      %s87 = sphi 0, %s86
      %s101 = sphi 0, %s87
      %s105 = sphi 0, %s105
      %s107 = sphi 0, %s105
      %s108 = sphi 0, %s107
      %s122 = sphi 0, %s108
      %s126 = sphi 0, %s126
      %s128 = sphi 0, %s126
      %s129 = sphi 0, %s128
      %s143 = sphi 0, %s129
      %s147 = sphi 0, %s147
      %s149 = sphi 0, %s147
      %s150 = sphi 0, %s149
      %s164 = sphi 0, %s150
      %s168 = sphi 0, %s168
      %s170 = sphi 0, %s168
      %s171 = sphi 0, %s170
      %s185 = sphi 0, %s171
      %s189 = sphi 0, %s189
      %s191 = sphi 0, %s189
      %s192 = sphi 0, %s191
      %s206 = sphi 0, %s192
      %s210 = sphi 0, %s210
      %s212 = sphi 0, %s210
      %s213 = sphi 0, %s212
      %s227 = sphi 0, %s213
      %s231 = sphi 0, %s231
      %s233 = sphi 0, %s231
      %s234 = sphi 0, %s233
      %s248 = sphi 0, %s234
      %s254 = sphi 0, %s256
      %s257 = sphi 0, %s254
      %s258 = sphi 0, %s257
      %s274 = sphi 0, %s258
      %s280 = sphi 0, %s282
      %s283 = sphi 0, %s280
      %s284 = sphi 0, %s283
      %s300 = sphi 0, %s284
    $region4: #{tpu_custom_call.1} parent=1 // loop_header_branch
      %27 = sbr.rel (%p25) target = $region8
    $region5: #{tpu_custom_call.1} parent=1 // loop_body
      %s29 = ssub.s32 %s24, 1
      %s30 = ssub.s32 %s24, 2
      %s31 = sadd.s32 %s24, 1
      %s32 = ssub.s32 %s24, %s31
      %p33 = scmp.eq.s32.totalorder %s32, 0
      %s35 = sadd.s32 %s34, 1
      %s36 = scalar_select %p33, %s34, %s35
      %p39 = pneg %p33
      %p40 = scmp.eq.s32.totalorder %s24, 1
      %p41 = por %p39, %p40
      %p42 = scmp.ne.s32.totalorder %s34, %s37
      %p43 = scmp.eq.s32.totalorder %s24, 0
      %p44 = por %p42, %p43
      %p45 = scmp.ne.s32.totalorder %s34, %s37
      %p46 = scmp.eq.s32.totalorder %s29, 1
      %p47 = por %p45, %p46
      %p48 = scmp.ne.s32.totalorder %s37, %s38
      %p49 = scmp.eq.s32.totalorder %s29, 0
      %p50 = por %p48, %p49
      %p51 = scmp.ne.s32.totalorder %s37, %s38
      %p52 = scmp.eq.s32.totalorder %s30, 1
      %p53 = por %p51, %p52
      %p55 = scmp.ne.s32.totalorder %s38, %s54
      %p56 = scmp.eq.s32.totalorder %s30, 0
      %p57 = por %p55, %p56
      %s58 = ssub.s32 %s24, %s31
      %p59 = scmp.eq.s32.totalorder %s58, 0
      %s61 = sadd.s32 %s60, 1
      %s62 = scalar_select %p59, %s60, %s61
      %p65 = pneg %p59
      %p66 = scmp.eq.s32.totalorder %s24, 1
      %p67 = por %p65, %p66
      %p68 = scmp.ne.s32.totalorder %s60, %s63
      %p69 = scmp.eq.s32.totalorder %s24, 0
      %p70 = por %p68, %p69
      %p71 = scmp.ne.s32.totalorder %s60, %s63
      %p72 = scmp.eq.s32.totalorder %s29, 1
      %p73 = por %p71, %p72
      %p74 = scmp.ne.s32.totalorder %s63, %s64
      %p75 = scmp.eq.s32.totalorder %s29, 0
      %p76 = por %p74, %p75
      %p77 = scmp.ne.s32.totalorder %s63, %s64
      %p78 = scmp.eq.s32.totalorder %s30, 1
      %p79 = por %p77, %p78
      %p81 = scmp.ne.s32.totalorder %s64, %s80
      %p82 = scmp.eq.s32.totalorder %s30, 0
      %p83 = por %p81, %p82
      %s85 = sadd.s32 %s84, 1
      %p88 = scmp.eq.s32.totalorder %s24, 1
      %p89 = scmp.ne.s32.totalorder %s84, %s86
      %p90 = scmp.eq.s32.totalorder %s24, 0
      %p91 = por %p89, %p90
      %p92 = scmp.ne.s32.totalorder %s84, %s86
      %p93 = scmp.eq.s32.totalorder %s29, 1
      %p94 = por %p92, %p93
      %p95 = scmp.ne.s32.totalorder %s86, %s87
      %p96 = scmp.eq.s32.totalorder %s29, 0
      %p97 = por %p95, %p96
      %p98 = scmp.ne.s32.totalorder %s86, %s87
      %p99 = scmp.eq.s32.totalorder %s30, 1
      %p100 = por %p98, %p99
      %p102 = scmp.ne.s32.totalorder %s87, %s101
      %p103 = scmp.eq.s32.totalorder %s30, 0
      %p104 = por %p102, %p103
      %s106 = sadd.s32 %s105, 1
      %p109 = scmp.eq.s32.totalorder %s24, 1
      %p110 = scmp.ne.s32.totalorder %s105, %s107
      %p111 = scmp.eq.s32.totalorder %s24, 0
      %p112 = por %p110, %p111
      %p113 = scmp.ne.s32.totalorder %s105, %s107
      %p114 = scmp.eq.s32.totalorder %s29, 1
      %p115 = por %p113, %p114
      %p116 = scmp.ne.s32.totalorder %s107, %s108
      %p117 = scmp.eq.s32.totalorder %s29, 0
      %p118 = por %p116, %p117
      %p119 = scmp.ne.s32.totalorder %s107, %s108
      %p120 = scmp.eq.s32.totalorder %s30, 1
      %p121 = por %p119, %p120
      %p123 = scmp.ne.s32.totalorder %s108, %s122
      %p124 = scmp.eq.s32.totalorder %s30, 0
      %p125 = por %p123, %p124
      %s127 = sadd.s32 %s126, 1
      %p130 = scmp.eq.s32.totalorder %s24, 1
      %p131 = scmp.ne.s32.totalorder %s126, %s128
      %p132 = scmp.eq.s32.totalorder %s24, 0
      %p133 = por %p131, %p132
      %p134 = scmp.ne.s32.totalorder %s126, %s128
      %p135 = scmp.eq.s32.totalorder %s29, 1
      %p136 = por %p134, %p135
      %p137 = scmp.ne.s32.totalorder %s128, %s129
      %p138 = scmp.eq.s32.totalorder %s29, 0
      %p139 = por %p137, %p138
      %p140 = scmp.ne.s32.totalorder %s128, %s129
      %p141 = scmp.eq.s32.totalorder %s30, 1
      %p142 = por %p140, %p141
      %p144 = scmp.ne.s32.totalorder %s129, %s143
      %p145 = scmp.eq.s32.totalorder %s30, 0
      %p146 = por %p144, %p145
      %s148 = sadd.s32 %s147, 1
      %p151 = scmp.eq.s32.totalorder %s24, 1
      %p152 = scmp.ne.s32.totalorder %s147, %s149
      %p153 = scmp.eq.s32.totalorder %s24, 0
      %p154 = por %p152, %p153
      %p155 = scmp.ne.s32.totalorder %s147, %s149
      %p156 = scmp.eq.s32.totalorder %s29, 1
      %p157 = por %p155, %p156
      %p158 = scmp.ne.s32.totalorder %s149, %s150
      %p159 = scmp.eq.s32.totalorder %s29, 0
      %p160 = por %p158, %p159
      %p161 = scmp.ne.s32.totalorder %s149, %s150
      %p162 = scmp.eq.s32.totalorder %s30, 1
      %p163 = por %p161, %p162
      %p165 = scmp.ne.s32.totalorder %s150, %s164
      %p166 = scmp.eq.s32.totalorder %s30, 0
      %p167 = por %p165, %p166
      %s169 = sadd.s32 %s168, 1
      %p172 = scmp.eq.s32.totalorder %s24, 1
      %p173 = scmp.ne.s32.totalorder %s168, %s170
      %p174 = scmp.eq.s32.totalorder %s24, 0
      %p175 = por %p173, %p174
      %p176 = scmp.ne.s32.totalorder %s168, %s170
      %p177 = scmp.eq.s32.totalorder %s29, 1
      %p178 = por %p176, %p177
      %p179 = scmp.ne.s32.totalorder %s170, %s171
      %p180 = scmp.eq.s32.totalorder %s29, 0
      %p181 = por %p179, %p180
      %p182 = scmp.ne.s32.totalorder %s170, %s171
      %p183 = scmp.eq.s32.totalorder %s30, 1
      %p184 = por %p182, %p183
      %p186 = scmp.ne.s32.totalorder %s171, %s185
      %p187 = scmp.eq.s32.totalorder %s30, 0
      %p188 = por %p186, %p187
      %s190 = sadd.s32 %s189, 1
      %p193 = scmp.eq.s32.totalorder %s24, 1
      %p194 = scmp.ne.s32.totalorder %s189, %s191
      %p195 = scmp.eq.s32.totalorder %s24, 0
      %p196 = por %p194, %p195
      %p197 = scmp.ne.s32.totalorder %s189, %s191
      %p198 = scmp.eq.s32.totalorder %s29, 1
      %p199 = por %p197, %p198
      %p200 = scmp.ne.s32.totalorder %s191, %s192
      %p201 = scmp.eq.s32.totalorder %s29, 0
      %p202 = por %p200, %p201
      %p203 = scmp.ne.s32.totalorder %s191, %s192
      %p204 = scmp.eq.s32.totalorder %s30, 1
      %p205 = por %p203, %p204
      %p207 = scmp.ne.s32.totalorder %s192, %s206
      %p208 = scmp.eq.s32.totalorder %s30, 0
      %p209 = por %p207, %p208
      %s211 = sadd.s32 %s210, 1
      %p214 = scmp.eq.s32.totalorder %s24, 1
      %p215 = scmp.ne.s32.totalorder %s210, %s212
      %p216 = scmp.eq.s32.totalorder %s24, 0
      %p217 = por %p215, %p216
      %p218 = scmp.ne.s32.totalorder %s210, %s212
      %p219 = scmp.eq.s32.totalorder %s29, 1
      %p220 = por %p218, %p219
      %p221 = scmp.ne.s32.totalorder %s212, %s213
      %p222 = scmp.eq.s32.totalorder %s29, 0
      %p223 = por %p221, %p222
      %p224 = scmp.ne.s32.totalorder %s212, %s213
      %p225 = scmp.eq.s32.totalorder %s30, 1
      %p226 = por %p224, %p225
      %p228 = scmp.ne.s32.totalorder %s213, %s227
      %p229 = scmp.eq.s32.totalorder %s30, 0
      %p230 = por %p228, %p229
      %s232 = sadd.s32 %s231, 1
      %p235 = scmp.eq.s32.totalorder %s24, 1
      %p236 = scmp.ne.s32.totalorder %s231, %s233
      %p237 = scmp.eq.s32.totalorder %s24, 0
      %p238 = por %p236, %p237
      %p239 = scmp.ne.s32.totalorder %s231, %s233
      %p240 = scmp.eq.s32.totalorder %s29, 1
      %p241 = por %p239, %p240
      %p242 = scmp.ne.s32.totalorder %s233, %s234
      %p243 = scmp.eq.s32.totalorder %s29, 0
      %p244 = por %p242, %p243
      %p245 = scmp.ne.s32.totalorder %s233, %s234
      %p246 = scmp.eq.s32.totalorder %s30, 1
      %p247 = por %p245, %p246
      %p249 = scmp.ne.s32.totalorder %s234, %s248
      %p250 = scmp.eq.s32.totalorder %s30, 0
      %p251 = por %p249, %p250
      %s252 = ssub.s32 %s24, %s31
      %p253 = scmp.eq.s32.totalorder %s252, 0
      %s255 = sadd.s32 %s254, 1
      %s256 = scalar_select %p253, %s254, %s255
      %p259 = pneg %p253
      %p260 = scmp.eq.s32.totalorder %s24, 1
      %p261 = por %p259, %p260
      %p262 = scmp.ne.s32.totalorder %s254, %s257
      %p263 = scmp.eq.s32.totalorder %s24, 0
      %p264 = por %p262, %p263
      %p265 = scmp.ne.s32.totalorder %s254, %s257
      %p266 = scmp.eq.s32.totalorder %s29, 1
      %p267 = por %p265, %p266
      %p268 = scmp.ne.s32.totalorder %s257, %s258
      %p269 = scmp.eq.s32.totalorder %s29, 0
      %p270 = por %p268, %p269
      %p271 = scmp.ne.s32.totalorder %s257, %s258
      %p272 = scmp.eq.s32.totalorder %s30, 1
      %p273 = por %p271, %p272
      %p275 = scmp.ne.s32.totalorder %s258, %s274
      %p276 = scmp.eq.s32.totalorder %s30, 0
      %p277 = por %p275, %p276
      %s278 = ssub.s32 %s24, %s31
      %p279 = scmp.eq.s32.totalorder %s278, 0
      %s281 = sadd.s32 %s280, 1
      %s282 = scalar_select %p279, %s280, %s281
      %p285 = pneg %p279
      %p286 = scmp.eq.s32.totalorder %s24, 1
      %p287 = por %p285, %p286
      %p288 = scmp.ne.s32.totalorder %s280, %s283
      %p289 = scmp.eq.s32.totalorder %s24, 0
      %p290 = por %p288, %p289
      %p291 = scmp.ne.s32.totalorder %s280, %s283
      %p292 = scmp.eq.s32.totalorder %s29, 1
      %p293 = por %p291, %p292
      %p294 = scmp.ne.s32.totalorder %s283, %s284
      %p295 = scmp.eq.s32.totalorder %s29, 0
      %p296 = por %p294, %p295
      %p297 = scmp.ne.s32.totalorder %s283, %s284
      %p298 = scmp.eq.s32.totalorder %s30, 1
      %p299 = por %p297, %p298
      %p301 = scmp.ne.s32.totalorder %s284, %s300
      %p302 = scmp.eq.s32.totalorder %s30, 0
      %p303 = por %p301, %p302
      %p304 = scmp.le.s32.totalorder 1, %s24
      %p305 = scmp.lt.s32.totalorder %s24, 3
      %p306 = pnand %p304, %p305
      %p307 = pneg %p306
      // Predicated region
      $region9: #{tpu_custom_call.1} parent=5 // pred_check
        _
      $region10: #{tpu_custom_call.1} parent=5 // pred_check_branch
        %309 = sbr.rel (%p306) target = $region12
      $region11: #{tpu_custom_call.1} parent=5 // pred_region
        %s310 = ssub.s32 %s24, 1
        // Predicated region
        $region13: #{tpu_custom_call.1} parent=11 // pred_check
          %p311 = pneg %p97
        $region14: #{tpu_custom_call.1} parent=11 // pred_check_branch
          %313 = sbr.rel (%p311) target = $region16
        $region15: #{tpu_custom_call.1} parent=11 // pred_region
          _
        $region16: #{tpu_custom_call.1} parent=11 // pred_fallthru
          _
        // Predicated region
        $region17: #{tpu_custom_call.1} parent=11 // pred_check
          %p314 = pneg %p118
        $region18: #{tpu_custom_call.1} parent=11 // pred_check_branch
          %316 = sbr.rel (%p314) target = $region20
        $region19: #{tpu_custom_call.1} parent=11 // pred_region
          _
        $region20: #{tpu_custom_call.1} parent=11 // pred_fallthru
          _
        // Predicated region
        $region21: #{tpu_custom_call.1} parent=11 // pred_check
          %p317 = pneg %p139
        $region22: #{tpu_custom_call.1} parent=11 // pred_check_branch
          %319 = sbr.rel (%p317) target = $region24
        $region23: #{tpu_custom_call.1} parent=11 // pred_region
          _
        $region24: #{tpu_custom_call.1} parent=11 // pred_fallthru
          _
        // Predicated region
        $region25: #{tpu_custom_call.1} parent=11 // pred_check
          %p320 = pneg %p160
        $region26: #{tpu_custom_call.1} parent=11 // pred_check_branch
          %322 = sbr.rel (%p320) target = $region28
        $region27: #{tpu_custom_call.1} parent=11 // pred_region
          _
        $region28: #{tpu_custom_call.1} parent=11 // pred_fallthru
          _
        // Predicated region
        $region29: #{tpu_custom_call.1} parent=11 // pred_check
          %p323 = pneg %p181
        $region30: #{tpu_custom_call.1} parent=11 // pred_check_branch
          %325 = sbr.rel (%p323) target = $region32
        $region31: #{tpu_custom_call.1} parent=11 // pred_region
          _
        $region32: #{tpu_custom_call.1} parent=11 // pred_fallthru
          _
        // Predicated region
        $region33: #{tpu_custom_call.1} parent=11 // pred_check
          %p326 = pneg %p202
        $region34: #{tpu_custom_call.1} parent=11 // pred_check_branch
          %328 = sbr.rel (%p326) target = $region36
        $region35: #{tpu_custom_call.1} parent=11 // pred_region
          _
        $region36: #{tpu_custom_call.1} parent=11 // pred_fallthru
          _
        // Predicated region
        $region37: #{tpu_custom_call.1} parent=11 // pred_check
          %p329 = pneg %p223
        $region38: #{tpu_custom_call.1} parent=11 // pred_check_branch
          %331 = sbr.rel (%p329) target = $region40
        $region39: #{tpu_custom_call.1} parent=11 // pred_region
          _
        $region40: #{tpu_custom_call.1} parent=11 // pred_fallthru
          _
        // Predicated region
        $region41: #{tpu_custom_call.1} parent=11 // pred_check
          %p332 = pneg %p244
        $region42: #{tpu_custom_call.1} parent=11 // pred_check_branch
          %334 = sbr.rel (%p332) target = $region44
        $region43: #{tpu_custom_call.1} parent=11 // pred_region
          _
        $region44: #{tpu_custom_call.1} parent=11 // pred_fallthru
          _
      $region12: #{tpu_custom_call.1} parent=5 // pred_fallthru
        _
      %p335 = scmp.lt.s32.totalorder %s24, 2
      // Predicated region
      $region45: #{tpu_custom_call.1} parent=5 // pred_check
        %p336 = pneg %p335
      $region46: #{tpu_custom_call.1} parent=5 // pred_check_branch
        %338 = sbr.rel (%p336) target = $region48
      $region47: #{tpu_custom_call.1} parent=5 // pred_region
        // Predicated region
        $region49: #{tpu_custom_call.1} parent=47 // pred_check
          %p339 = pneg %p44
        $region50: #{tpu_custom_call.1} parent=47 // pred_check_branch
          %341 = sbr.rel (%p339) target = $region52
        $region51: #{tpu_custom_call.1} parent=47 // pred_region
          %p342 = scmp.lt.s32.totalorder %s24, 1
          %s343 = scalar_select %p342, %s24, 1
          %s344 = smul.addr %s343, 2
          %s345 = smul.addr %s344, 8
          %s346 = scalar_lea.vmem %s0, %s345
        $region52: #{tpu_custom_call.1} parent=47 // pred_fallthru
          _
        // Predicated region
        $region53: #{tpu_custom_call.1} parent=47 // pred_check
          %p347 = pneg %p70
        $region54: #{tpu_custom_call.1} parent=47 // pred_check_branch
          %349 = sbr.rel (%p347) target = $region56
        $region55: #{tpu_custom_call.1} parent=47 // pred_region
          %p350 = scmp.lt.s32.totalorder %s24, 1
          %s351 = scalar_select %p350, %s24, 1
          %s352 = smul.addr %s351, 8
          %s353 = scalar_lea.vmem %s1, %s352
        $region56: #{tpu_custom_call.1} parent=47 // pred_fallthru
          _
      $region48: #{tpu_custom_call.1} parent=5 // pred_fallthru
        _
      %p354 = scmp.le.s32.totalorder 1, %s24
      %p355 = scmp.lt.s32.totalorder %s24, 3
      %p356 = pnand %p354, %p355
      %p357 = pneg %p356
      // Predicated region
      $region57: #{tpu_custom_call.1} parent=5 // pred_check
        _
      $region58: #{tpu_custom_call.1} parent=5 // pred_check_branch
        %359 = sbr.rel (%p356) target = $region60
      $region59: #{tpu_custom_call.1} parent=5 // pred_region
        %s360 = ssub.s32 %s24, 1
        %p361 = scmp.lt.s32.totalorder %s29, 1
        %s362 = scalar_select %p361, %s29, 1
        %s363 = smul.addr %s362, 2
        %s364 = smul.addr %s363, 8
        %s365 = scalar_lea.vmem %s0, %s364
        %p366 = pneg %p50
        %p367 = pneg %p47
        %p368 = scmp.lt.s32.totalorder %s29, 1
        %s369 = scalar_select %p368, %s29, 1
        %s370 = smul.addr %s369, 8
        %s371 = scalar_lea.vmem %s1, %s370
        %p372 = pneg %p76
        %p373 = pneg %p73
        %p374 = pneg %p97
        %p375 = pneg %p94
        %p376 = pneg %p118
        %p377 = pneg %p115
        %p378 = pneg %p139
        %p379 = pneg %p136
        %p380 = pneg %p160
        %p381 = pneg %p157
        %p382 = pneg %p181
        %p383 = pneg %p178
        %p384 = pneg %p202
        %p385 = pneg %p199
        %p386 = pneg %p223
        %p387 = pneg %p220
        %p388 = pneg %p244
        %p389 = pneg %p241
        %p390 = pneg %p270
        %p391 = pneg %p267
        %s392 = sand.u32 %s257, 1
        %s393 = scalar_lea.sflag [#allocation4], %s392
        %s394 = sand.u32 %s257, 1
        %s395 = smul.addr %s394, 32
        %s396 = scalar_lea.vmem [#allocation3], %s395
        %p397 = pneg %p296
        %p398 = pneg %p293
        %s399 = sand.u32 %s283, 1
        %s400 = scalar_lea.sflag [#allocation6], %s399
        %s401 = sand.u32 %s283, 1
        %s402 = smul.addr %s401, 8
        %s403 = scalar_lea.vmem [#allocation5], %s402
        %p404 = scmp.lt.s32.totalorder %s29, 1
        %s405 = scalar_select %p404, %s29, 1
        %s406 = smul.addr %s405, 2
        %s407 = smul.addr %s406, 8
        %s408 = scalar_lea.vmem %s0, %s407
        %p409 = scmp.lt.s32.totalorder %s29, 1
        %s410 = scalar_select %p409, %s29, 1
        %s411 = smul.addr %s410, 8
        %s412 = scalar_lea.vmem %s1, %s411
        %v414 = vld [vmem:[%s408] sm:$0xff]
        %v415 = vld [vmem:[%s408 + $0x8] sm:$0xff]
        %v416 = vld [vmem:[%s412] sm:$0x1]
        %v417 = vlaneseq
        %v418 = vshrl.u32 %v417, 7
        %v419 = vsub.s32 0, %v418
        %v420 = vrot.slane %v416, %v419
        %v421 = vld [vmem:[%s2] sm:$0xf]
        %v422 = vld [vmem:[%s2 + $0x4] sm:$0xf]
        %v423 = vld [vmem:[%s2 + $0x8] sm:$0xf]
        %v424 = vld [vmem:[%s2 + $0xc] sm:$0xf]
        %v425 = vpack.c.bf16 %v415, %v414
        %v426 = vld [vmem:[%s3] sm:$0xff]
        %v427 = vld [vmem:[%s3 + $0x8] sm:$0xff]
        %v428 = vld [vmem:[%s3 + $0x10] sm:$0xff]
        %v429 = vld [vmem:[%s3 + $0x18] sm:$0xff]
        %431 = vset.pattern.permute.xlu0 0
        %432 = vperm.xlu0 %431, %v426
        %v433 = vpop.permute.xlu0 %432
        %436 = vset.pattern.permute.xlu0 0
        %437 = vperm.xlu0 %436, %v427
        %v438 = vpop.permute.xlu0 %437
        %441 = vset.pattern.permute.xlu0 0
        %442 = vperm.xlu0 %441, %v428
        %v443 = vpop.permute.xlu0 %442
        %446 = vset.pattern.permute.xlu0 0
        %447 = vperm.xlu0 %446, %v429
        %v448 = vpop.permute.xlu0 %447
        %v454 = vunpack.c.l.b16 %v421
        %v455 = vunpack.c.l.b16 %v422
        %v456 = vunpack.c.l.b16 %v423
        %v457 = vunpack.c.l.b16 %v424
        %v458 = vpack.c.b16 %v455, %v454
        %v459 = vpack.c.b16 %v457, %v456
        %vm460 = vcmask 130048
        %v462 = vsel %vm460, %v458, 0
        %v465 = vsel %vm460, %v459, 0
        %467 = vmatprep.subr.bf16.mxu0 0
        %468 = vmatpush1.bf16.msra.mxu0 %v425
        %469 = vmatprep.subr.bf16.mxu0 0
        %470 = vmatpush1.bf16.msra.mxu0 0
        %471 = vmatprep.subr.bf16.mxu0 0
        %472 = vmatpush1.bf16.msra.mxu0 0
        %473 = vmatprep.subr.bf16.mxu0 0
        %474 = vmatpush1.bf16.msra.mxu0 0
        %475 = vmatprep.subr.bf16.mxu0 0
        %476 = vmatpush1.bf16.msra.mxu0 0
        %477 = vmatprep.subr.bf16.mxu0 0
        %478 = vmatpush1.bf16.msra.mxu0 0
        %479 = vmatprep.subr.bf16.mxu0 0
        %480 = vmatpush1.bf16.msra.mxu0 0
        %481 = vmatprep.subr.bf16.mxu0 0
        %482 = vmatpush1.bf16.msra.mxu0 0
        %483 = vmatprep.subr.bf16.mxu0 0
        %484 = vmatpush1.bf16.msra.mxu0 0
        %485 = vmatprep.subr.bf16.mxu0 0
        %486 = vmatpush1.bf16.msra.mxu0 0
        %487 = vmatprep.subr.bf16.mxu0 0
        %488 = vmatpush1.bf16.msra.mxu0 0
        %489 = vmatprep.subr.bf16.mxu0 0
        %490 = vmatpush1.bf16.msra.mxu0 0
        %491 = vmatprep.subr.bf16.mxu0 0
        %492 = vmatpush1.bf16.msra.mxu0 0
        %493 = vmatprep.subr.bf16.mxu0 0
        %494 = vmatpush1.bf16.msra.mxu0 0
        %495 = vmatprep.subr.bf16.mxu0 0
        %496 = vmatpush1.bf16.msra.mxu0 0
        %497 = vmatprep.subr.bf16.mxu0 0
        %498 = vmatpush1.bf16.msra.mxu0 0
        %499 = vmatprep.mubr.bf16.mxu0 0
        %500 = vmatmul.mubr.bf16.gmra.mrb[0].mxu0 %v462
        %v501 = vpop.f32.mrb[0].mxu0
        %v502 = vadd.f32 %v433, %v501
        %v503 = vpop.f32.mrb[0].mxu0
        %v504 = vpop.f32.mrb[0].mxu0
        %v505 = vadd.f32 %v438, %v504
        %v506 = vpop.f32.mrb[0].mxu0
        %507 = vmatprep.mubr.bf16.mxu0 0
        %508 = vmatmul.mubr.bf16.gmra.mrb[0].mxu0 %v465
        %v509 = vpop.f32.mrb[0].mxu0
        %v510 = vadd.f32 %v443, %v509
        %v511 = vpop.f32.mrb[0].mxu0
        %v512 = vpop.f32.mrb[0].mxu0
        %v513 = vadd.f32 %v448, %v512
        %v514 = vpop.f32.mrb[0].mxu0
        %515 = vdwg.mxu0
        %516 = vst [vmem:[#allocation2] sm:$0xff] 0.0
        %517 = vst [vmem:[#allocation2 + $0x8] sm:$0xff] 0.0
        %518 = vst [vmem:[#allocation2 + $0x10] sm:$0xff] 0.0
        %519 = vst [vmem:[#allocation2 + $0x18] sm:$0xff] 0.0
        %520 = vst [vmem:[#allocation2 + $0x20] sm:$0xff] 0.0
        %521 = vst [vmem:[#allocation2 + $0x28] sm:$0xff] 0.0
        %522 = vst [vmem:[#allocation2 + $0x30] sm:$0xff] 0.0
        %523 = vst [vmem:[#allocation2 + $0x38] sm:$0xff] 0.0
        %524 = vst [vmem:[#allocation2 + $0x40] sm:$0xff] 0.0
        %525 = vst [vmem:[#allocation2 + $0x48] sm:$0xff] 0.0
        %526 = vst [vmem:[#allocation2 + $0x50] sm:$0xff] 0.0
        %527 = vst [vmem:[#allocation2 + $0x58] sm:$0xff] 0.0
        %528 = vst [vmem:[#allocation2 + $0x8] sm:$0xff] %v502
        %529 = vst [vmem:[#allocation2 + $0x20] sm:$0xff] %v505
        %530 = vst [vmem:[#allocation2 + $0x38] sm:$0xff] %v510
        %531 = vst [vmem:[#allocation2 + $0x50] sm:$0xff] %v513
        %v532 = vld [vmem:[#allocation2] sm:$0xff]
        %v533 = vld [vmem:[#allocation2 + $0x8] sm:$0xff]
        %v534 = vld [vmem:[#allocation2 + $0x18] sm:$0xff]
        %v535 = vld [vmem:[#allocation2 + $0x20] sm:$0xff]
        %v536 = vld [vmem:[#allocation2 + $0x30] sm:$0xff]
        %v537 = vld [vmem:[#allocation2 + $0x38] sm:$0xff]
        %v538 = vld [vmem:[#allocation2 + $0x48] sm:$0xff]
        %v539 = vld [vmem:[#allocation2 + $0x50] sm:$0xff]
        %v540 = vld [vmem:[#allocation2 + $0x8] sm:$0xff]
        %v541 = vld [vmem:[#allocation2 + $0x10] sm:$0xff]
        %v542 = vld [vmem:[#allocation2 + $0x20] sm:$0xff]
        %v543 = vld [vmem:[#allocation2 + $0x28] sm:$0xff]
        %v544 = vld [vmem:[#allocation2 + $0x38] sm:$0xff]
        %v545 = vld [vmem:[#allocation2 + $0x40] sm:$0xff]
        %v546 = vld [vmem:[#allocation2 + $0x50] sm:$0xff]
        %v547 = vld [vmem:[#allocation2 + $0x58] sm:$0xff]
        %552 = vrot.lane.b32.xlu0 %v533, 127
        %v553 = vpop.permute.xlu0 %552
        %554 = vrot.lane.b32.xlu0 %v535, 127
        %v555 = vpop.permute.xlu0 %554
        %556 = vrot.lane.b32.xlu0 %v537, 127
        %v557 = vpop.permute.xlu0 %556
        %558 = vrot.lane.b32.xlu0 %v539, 127
        %v559 = vpop.permute.xlu0 %558
        %572 = vrot.lane.b32.xlu0 %v540, 126
        %v573 = vpop.permute.xlu0 %572
        %574 = vrot.lane.b32.xlu0 %v541, 126
        %v575 = vpop.permute.xlu0 %574
        %576 = vrot.lane.b32.xlu0 %v542, 126
        %v577 = vpop.permute.xlu0 %576
        %578 = vrot.lane.b32.xlu0 %v543, 126
        %v579 = vpop.permute.xlu0 %578
        %580 = vrot.lane.b32.xlu0 %v544, 126
        %v581 = vpop.permute.xlu0 %580
        %582 = vrot.lane.b32.xlu0 %v545, 126
        %v583 = vpop.permute.xlu0 %582
        %584 = vrot.lane.b32.xlu0 %v546, 126
        %v585 = vpop.permute.xlu0 %584
        %586 = vrot.lane.b32.xlu0 %v547, 126
        %v587 = vpop.permute.xlu0 %586
        %vm588 = vcmask 1031168
        %v589 = vsel %vm588, %v573, %v575
        %v590 = vsel %vm588, %v577, %v579
        %v591 = vsel %vm588, %v581, %v583
        %v592 = vsel %vm588, %v585, %v587
        %v601 = vld [vmem:[%s4] sm:$0xf]
        %v602 = vld [vmem:[%s4 + $0x4] sm:$0xf]
        %v603 = vld [vmem:[%s4 + $0x8] sm:$0xf]
        %v604 = vld [vmem:[%s4 + $0xc] sm:$0xf]
        %v605 = vpack.c.bf16 %v534, %v532
        %v606 = vpack.c.bf16 %v535, %v533
        %v607 = vpack.c.bf16 %v538, %v536
        %v608 = vpack.c.bf16 %v539, %v537
        %v609 = vpack.c.bf16 %v555, %v553
        %v610 = vpack.c.bf16 %v559, %v557
        %v611 = vpack.c.bf16 %v577, %v573
        %v612 = vpack.c.bf16 %v590, %v589
        %v613 = vpack.c.bf16 %v585, %v581
        %v614 = vpack.c.bf16 %v592, %v591
        %v615 = vld [vmem:[%s5] sm:$0xff]
        %v616 = vld [vmem:[%s5 + $0x8] sm:$0xff]
        %v617 = vld [vmem:[%s5 + $0x10] sm:$0xff]
        %v618 = vld [vmem:[%s5 + $0x18] sm:$0xff]
        %620 = vset.pattern.permute.xlu0 0
        %621 = vperm.xlu0 %620, %v615
        %v622 = vpop.permute.xlu0 %621
        %625 = vset.pattern.permute.xlu0 0
        %626 = vperm.xlu0 %625, %v616
        %v627 = vpop.permute.xlu0 %626
        %630 = vset.pattern.permute.xlu0 0
        %631 = vperm.xlu0 %630, %v617
        %v632 = vpop.permute.xlu0 %631
        %635 = vset.pattern.permute.xlu0 0
        %636 = vperm.xlu0 %635, %v618
        %v637 = vpop.permute.xlu0 %636
        %v643 = vunpack.c.l.b16 %v601
        %v644 = vunpack.c.l.b16 %v602
        %v645 = vunpack.c.l.b16 %v603
        %v646 = vunpack.c.l.b16 %v604
        %v647 = vpack.c.b16 %v644, %v643
        %v648 = vpack.c.b16 %v646, %v645
        %659 = vrot.lane.b32.xlu0 %v605, 1
        %v660 = vpop.permute.xlu0 %659
        %661 = vrot.lane.b32.xlu0 %v606, 1
        %v662 = vpop.permute.xlu0 %661
        %663 = vrot.lane.b32.xlu0 %v607, 1
        %v664 = vpop.permute.xlu0 %663
        %665 = vrot.lane.b32.xlu0 %v608, 1
        %v666 = vpop.permute.xlu0 %665
        %667 = vrot.lane.b32.xlu0 %v609, 1
        %v668 = vpop.permute.xlu0 %667
        %669 = vrot.lane.b32.xlu0 %v610, 1
        %v670 = vpop.permute.xlu0 %669
        %671 = vrot.lane.b32.xlu0 %v611, 1
        %v672 = vpop.permute.xlu0 %671
        %673 = vrot.lane.b32.xlu0 %v612, 1
        %v674 = vpop.permute.xlu0 %673
        %675 = vrot.lane.b32.xlu0 %v613, 1
        %v676 = vpop.permute.xlu0 %675
        %677 = vrot.lane.b32.xlu0 %v614, 1
        %v678 = vpop.permute.xlu0 %677
        %vm679 = vcmask 7168
        %v680 = vsel %vm679, %v660, %v662
        %v681 = vsel %vm679, %v664, %v666
        %v682 = vsel %vm679, %v672, %v674
        %v683 = vsel %vm679, %v676, %v678
        %vm690 = vcmask 785408
        %v692 = vsel %vm690, %v647, 0
        %v695 = vsel %vm690, %v648, 0
        %697 = vmatprep.subr.bf16.mxu0 0
        %698 = vmatpush1.bf16.msra.mxu0 %v680
        %699 = vmatprep.subr.bf16.mxu0 0
        %700 = vmatpush1.bf16.msra.mxu0 %v681
        %701 = vmatprep.subr.bf16.mxu0 0
        %702 = vmatpush1.bf16.msra.mxu0 %v668
        %703 = vmatprep.subr.bf16.mxu0 0
        %704 = vmatpush1.bf16.msra.mxu0 %v670
        %705 = vmatprep.subr.bf16.mxu0 0
        %706 = vmatpush1.bf16.msra.mxu0 %v682
        %707 = vmatprep.subr.bf16.mxu0 0
        %708 = vmatpush1.bf16.msra.mxu0 %v683
        %709 = vmatprep.subr.bf16.mxu0 0
        %710 = vmatpush1.bf16.msra.mxu0 0
        %711 = vmatprep.subr.bf16.mxu0 0
        %712 = vmatpush1.bf16.msra.mxu0 0
        %713 = vmatprep.subr.bf16.mxu0 0
        %714 = vmatpush1.bf16.msra.mxu0 0
        %715 = vmatprep.subr.bf16.mxu0 0
        %716 = vmatpush1.bf16.msra.mxu0 0
        %717 = vmatprep.subr.bf16.mxu0 0
        %718 = vmatpush1.bf16.msra.mxu0 0
        %719 = vmatprep.subr.bf16.mxu0 0
        %720 = vmatpush1.bf16.msra.mxu0 0
        %721 = vmatprep.subr.bf16.mxu0 0
        %722 = vmatpush1.bf16.msra.mxu0 0
        %723 = vmatprep.subr.bf16.mxu0 0
        %724 = vmatpush1.bf16.msra.mxu0 0
        %725 = vmatprep.subr.bf16.mxu0 0
        %726 = vmatpush1.bf16.msra.mxu0 0
        %727 = vmatprep.subr.bf16.mxu0 0
        %728 = vmatpush1.bf16.msra.mxu0 0
        %729 = vmatprep.mubr.bf16.mxu0 0
        %730 = vmatmul.mubr.bf16.gmra.mrb[0].mxu0 %v692
        %v731 = vpop.f32.mrb[0].mxu0
        %v732 = vadd.f32 %v622, %v731
        %v733 = vpop.f32.mrb[0].mxu0
        %v734 = vpop.f32.mrb[0].mxu0
        %v735 = vadd.f32 %v627, %v734
        %v736 = vpop.f32.mrb[0].mxu0
        %737 = vmatprep.mubr.bf16.mxu0 0
        %738 = vmatmul.mubr.bf16.gmra.mrb[0].mxu0 %v695
        %v739 = vpop.f32.mrb[0].mxu0
        %v740 = vadd.f32 %v632, %v739
        %v741 = vpop.f32.mrb[0].mxu0
        %v742 = vpop.f32.mrb[0].mxu0
        %v743 = vadd.f32 %v637, %v742
        %v744 = vpop.f32.mrb[0].mxu0
        %745 = vdwg.mxu0
        %v746 = vmax.f32 %v732, 0.0
        %v747 = vmax.f32 %v735, 0.0
        %v748 = vmax.f32 %v740, 0.0
        %v749 = vmax.f32 %v743, 0.0
        %v750 = vld [vmem:[%s6] sm:$0xf]
        %v751 = vld [vmem:[%s6 + $0x4] sm:$0xf]
        %v752 = vld [vmem:[%s6 + $0x8] sm:$0xf]
        %v753 = vld [vmem:[%s6 + $0xc] sm:$0xf]
        %v754 = vpack.c.bf16 %v747, %v746
        %v755 = vpack.c.bf16 %v749, %v748
        %v756 = vld [vmem:[%s7] sm:$0xff]
        %v757 = vld [vmem:[%s7 + $0x8] sm:$0xff]
        %v758 = vld [vmem:[%s7 + $0x10] sm:$0xff]
        %v759 = vld [vmem:[%s7 + $0x18] sm:$0xff]
        %761 = vset.pattern.permute.xlu0 0
        %762 = vperm.xlu0 %761, %v756
        %v763 = vpop.permute.xlu0 %762
        %766 = vset.pattern.permute.xlu0 0
        %767 = vperm.xlu0 %766, %v757
        %v768 = vpop.permute.xlu0 %767
        %771 = vset.pattern.permute.xlu0 0
        %772 = vperm.xlu0 %771, %v758
        %v773 = vpop.permute.xlu0 %772
        %776 = vset.pattern.permute.xlu0 0
        %777 = vperm.xlu0 %776, %v759
        %v778 = vpop.permute.xlu0 %777
        %v784 = vunpack.c.l.b16 %v750
        %v785 = vunpack.c.l.b16 %v751
        %v786 = vunpack.c.l.b16 %v752
        %v787 = vunpack.c.l.b16 %v753
        %v788 = vpack.c.b16 %v785, %v784
        %v789 = vpack.c.b16 %v787, %v786
        %vm790 = vcmask 261120
        %v792 = vsel %vm790, %v788, 0
        %v795 = vsel %vm790, %v789, 0
        %797 = vmatprep.subr.bf16.mxu0 0
        %798 = vmatpush1.bf16.msra.mxu0 %v754
        %799 = vmatprep.subr.bf16.mxu0 0
        %800 = vmatpush1.bf16.msra.mxu0 %v755
        %801 = vmatprep.subr.bf16.mxu0 0
        %802 = vmatpush1.bf16.msra.mxu0 0
        %803 = vmatprep.subr.bf16.mxu0 0
        %804 = vmatpush1.bf16.msra.mxu0 0
        %805 = vmatprep.subr.bf16.mxu0 0
        %806 = vmatpush1.bf16.msra.mxu0 0
        %807 = vmatprep.subr.bf16.mxu0 0
        %808 = vmatpush1.bf16.msra.mxu0 0
        %809 = vmatprep.subr.bf16.mxu0 0
        %810 = vmatpush1.bf16.msra.mxu0 0
        %811 = vmatprep.subr.bf16.mxu0 0
        %812 = vmatpush1.bf16.msra.mxu0 0
        %813 = vmatprep.subr.bf16.mxu0 0
        %814 = vmatpush1.bf16.msra.mxu0 0
        %815 = vmatprep.subr.bf16.mxu0 0
        %816 = vmatpush1.bf16.msra.mxu0 0
        %817 = vmatprep.subr.bf16.mxu0 0
        %818 = vmatpush1.bf16.msra.mxu0 0
        %819 = vmatprep.subr.bf16.mxu0 0
        %820 = vmatpush1.bf16.msra.mxu0 0
        %821 = vmatprep.subr.bf16.mxu0 0
        %822 = vmatpush1.bf16.msra.mxu0 0
        %823 = vmatprep.subr.bf16.mxu0 0
        %824 = vmatpush1.bf16.msra.mxu0 0
        %825 = vmatprep.subr.bf16.mxu0 0
        %826 = vmatpush1.bf16.msra.mxu0 0
        %827 = vmatprep.subr.bf16.mxu0 0
        %828 = vmatpush1.bf16.msra.mxu0 0
        %829 = vmatprep.mubr.bf16.mxu0 0
        %830 = vmatmul.mubr.bf16.gmra.mrb[0].mxu0 %v792
        %v831 = vpop.f32.mrb[0].mxu0
        %v832 = vadd.f32 %v763, %v831
        %v833 = vpop.f32.mrb[0].mxu0
        %v834 = vpop.f32.mrb[0].mxu0
        %v835 = vadd.f32 %v768, %v834
        %v836 = vpop.f32.mrb[0].mxu0
        %837 = vmatprep.mubr.bf16.mxu0 0
        %838 = vmatmul.mubr.bf16.gmra.mrb[0].mxu0 %v795
        %v839 = vpop.f32.mrb[0].mxu0
        %v840 = vadd.f32 %v773, %v839
        %v841 = vpop.f32.mrb[0].mxu0
        %v842 = vpop.f32.mrb[0].mxu0
        %v843 = vadd.f32 %v778, %v842
        %v844 = vpop.f32.mrb[0].mxu0
        %845 = vdwg.mxu0
        %v846 = vadd.f32 %v502, %v832
        %v847 = vadd.f32 %v505, %v835
        %v848 = vadd.f32 %v510, %v840
        %v849 = vadd.f32 %v513, %v843
        %v850 = vmul.f32 %v846, %v420
        %v851 = vmul.f32 %v847, %v420
        %v852 = vmul.f32 %v848, %v420
        %v853 = vmul.f32 %v849, %v420
        %854 = vst [vmem:[#allocation2 + $0x8] sm:$0xff] %v850
        %855 = vst [vmem:[#allocation2 + $0x20] sm:$0xff] %v851
        %856 = vst [vmem:[#allocation2 + $0x38] sm:$0xff] %v852
        %857 = vst [vmem:[#allocation2 + $0x50] sm:$0xff] %v853
        %v858 = vld [vmem:[#allocation2] sm:$0xff]
        %v859 = vld [vmem:[#allocation2 + $0x8] sm:$0xff]
        %v860 = vld [vmem:[#allocation2 + $0x18] sm:$0xff]
        %v861 = vld [vmem:[#allocation2 + $0x20] sm:$0xff]
        %v862 = vld [vmem:[#allocation2 + $0x30] sm:$0xff]
        %v863 = vld [vmem:[#allocation2 + $0x38] sm:$0xff]
        %v864 = vld [vmem:[#allocation2 + $0x48] sm:$0xff]
        %v865 = vld [vmem:[#allocation2 + $0x50] sm:$0xff]
        %v866 = vld [vmem:[#allocation2 + $0x8] sm:$0xff]
        %v867 = vld [vmem:[#allocation2 + $0x10] sm:$0xff]
        %v868 = vld [vmem:[#allocation2 + $0x20] sm:$0xff]
        %v869 = vld [vmem:[#allocation2 + $0x28] sm:$0xff]
        %v870 = vld [vmem:[#allocation2 + $0x38] sm:$0xff]
        %v871 = vld [vmem:[#allocation2 + $0x40] sm:$0xff]
        %v872 = vld [vmem:[#allocation2 + $0x50] sm:$0xff]
        %v873 = vld [vmem:[#allocation2 + $0x58] sm:$0xff]
        %878 = vrot.lane.b32.xlu0 %v859, 126
        %v879 = vpop.permute.xlu0 %878
        %880 = vrot.lane.b32.xlu0 %v861, 126
        %v881 = vpop.permute.xlu0 %880
        %882 = vrot.lane.b32.xlu0 %v863, 126
        %v883 = vpop.permute.xlu0 %882
        %884 = vrot.lane.b32.xlu0 %v865, 126
        %v885 = vpop.permute.xlu0 %884
        %898 = vrot.lane.b32.xlu0 %v866, 124
        %v899 = vpop.permute.xlu0 %898
        %900 = vrot.lane.b32.xlu0 %v867, 124
        %v901 = vpop.permute.xlu0 %900
        %902 = vrot.lane.b32.xlu0 %v868, 124
        %v903 = vpop.permute.xlu0 %902
        %904 = vrot.lane.b32.xlu0 %v869, 124
        %v905 = vpop.permute.xlu0 %904
        %906 = vrot.lane.b32.xlu0 %v870, 124
        %v907 = vpop.permute.xlu0 %906
        %908 = vrot.lane.b32.xlu0 %v871, 124
        %v909 = vpop.permute.xlu0 %908
        %910 = vrot.lane.b32.xlu0 %v872, 124
        %v911 = vpop.permute.xlu0 %910
        %912 = vrot.lane.b32.xlu0 %v873, 124
        %v913 = vpop.permute.xlu0 %912
        %vm914 = vcmask 1014784
        %v915 = vsel %vm914, %v899, %v901
        %v916 = vsel %vm914, %v903, %v905
        %v917 = vsel %vm914, %v907, %v909
        %v918 = vsel %vm914, %v911, %v913
        %s927 = scalar_lea.vmem %s4, 16
        %v928 = vld [vmem:[%s927] sm:$0xf]
        %v929 = vld [vmem:[%s927 + $0x4] sm:$0xf]
        %v930 = vld [vmem:[%s927 + $0x8] sm:$0xf]
        %v931 = vld [vmem:[%s927 + $0xc] sm:$0xf]
        %v932 = vpack.c.bf16 %v860, %v858
        %v933 = vpack.c.bf16 %v861, %v859
        %v934 = vpack.c.bf16 %v864, %v862
        %v935 = vpack.c.bf16 %v865, %v863
        %v936 = vpack.c.bf16 %v881, %v879
        %v937 = vpack.c.bf16 %v885, %v883
        %v938 = vpack.c.bf16 %v903, %v899
        %v939 = vpack.c.bf16 %v916, %v915
        %v940 = vpack.c.bf16 %v911, %v907
        %v941 = vpack.c.bf16 %v918, %v917
        %s942 = scalar_lea.vmem %s5, 32
        %v943 = vld [vmem:[%s942] sm:$0xff]
        %v944 = vld [vmem:[%s942 + $0x8] sm:$0xff]
        %v945 = vld [vmem:[%s942 + $0x10] sm:$0xff]
        %v946 = vld [vmem:[%s942 + $0x18] sm:$0xff]
        %948 = vset.pattern.permute.xlu0 0
        %949 = vperm.xlu0 %948, %v943
        %v950 = vpop.permute.xlu0 %949
        %953 = vset.pattern.permute.xlu0 0
        %954 = vperm.xlu0 %953, %v944
        %v955 = vpop.permute.xlu0 %954
        %958 = vset.pattern.permute.xlu0 0
        %959 = vperm.xlu0 %958, %v945
        %v960 = vpop.permute.xlu0 %959
        %963 = vset.pattern.permute.xlu0 0
        %964 = vperm.xlu0 %963, %v946
        %v965 = vpop.permute.xlu0 %964
        %v971 = vunpack.c.l.b16 %v928
        %v972 = vunpack.c.l.b16 %v929
        %v973 = vunpack.c.l.b16 %v930
        %v974 = vunpack.c.l.b16 %v931
        %v975 = vpack.c.b16 %v972, %v971
        %v976 = vpack.c.b16 %v974, %v973
        %987 = vrot.lane.b32.xlu0 %v932, 2
        %v988 = vpop.permute.xlu0 %987
        %989 = vrot.lane.b32.xlu0 %v933, 2
        %v990 = vpop.permute.xlu0 %989
        %991 = vrot.lane.b32.xlu0 %v934, 2
        %v992 = vpop.permute.xlu0 %991
        %993 = vrot.lane.b32.xlu0 %v935, 2
        %v994 = vpop.permute.xlu0 %993
        %995 = vrot.lane.b32.xlu0 %v936, 2
        %v996 = vpop.permute.xlu0 %995
        %997 = vrot.lane.b32.xlu0 %v937, 2
        %v998 = vpop.permute.xlu0 %997
        %999 = vrot.lane.b32.xlu0 %v938, 2
        %v1000 = vpop.permute.xlu0 %999
        %1001 = vrot.lane.b32.xlu0 %v939, 2
        %v1002 = vpop.permute.xlu0 %1001
        %1003 = vrot.lane.b32.xlu0 %v940, 2
        %v1004 = vpop.permute.xlu0 %1003
        %1005 = vrot.lane.b32.xlu0 %v941, 2
        %v1006 = vpop.permute.xlu0 %1005
        %vm1007 = vcmask 15360
        %v1008 = vsel %vm1007, %v988, %v990
        %v1009 = vsel %vm1007, %v992, %v994
        %v1010 = vsel %vm1007, %v1000, %v1002
        %v1011 = vsel %vm1007, %v1004, %v1006
        %v1019 = vsel %vm690, %v975, 0
        %v1022 = vsel %vm690, %v976, 0
        %1024 = vmatprep.subr.bf16.mxu0 0
        %1025 = vmatpush1.bf16.msra.mxu0 %v1008
        %1026 = vmatprep.subr.bf16.mxu0 0
        %1027 = vmatpush1.bf16.msra.mxu0 %v1009
        %1028 = vmatprep.subr.bf16.mxu0 0
        %1029 = vmatpush1.bf16.msra.mxu0 %v996
        %1030 = vmatprep.subr.bf16.mxu0 0
        %1031 = vmatpush1.bf16.msra.mxu0 %v998
        %1032 = vmatprep.subr.bf16.mxu0 0
        %1033 = vmatpush1.bf16.msra.mxu0 %v1010
        %1034 = vmatprep.subr.bf16.mxu0 0
        %1035 = vmatpush1.bf16.msra.mxu0 %v1011
        %1036 = vmatprep.subr.bf16.mxu0 0
        %1037 = vmatpush1.bf16.msra.mxu0 0
        %1038 = vmatprep.subr.bf16.mxu0 0
        %1039 = vmatpush1.bf16.msra.mxu0 0
        %1040 = vmatprep.subr.bf16.mxu0 0
        %1041 = vmatpush1.bf16.msra.mxu0 0
        %1042 = vmatprep.subr.bf16.mxu0 0
        %1043 = vmatpush1.bf16.msra.mxu0 0
        %1044 = vmatprep.subr.bf16.mxu0 0
        %1045 = vmatpush1.bf16.msra.mxu0 0
        %1046 = vmatprep.subr.bf16.mxu0 0
        %1047 = vmatpush1.bf16.msra.mxu0 0
        %1048 = vmatprep.subr.bf16.mxu0 0
        %1049 = vmatpush1.bf16.msra.mxu0 0
        %1050 = vmatprep.subr.bf16.mxu0 0
        %1051 = vmatpush1.bf16.msra.mxu0 0
        %1052 = vmatprep.subr.bf16.mxu0 0
        %1053 = vmatpush1.bf16.msra.mxu0 0
        %1054 = vmatprep.subr.bf16.mxu0 0
        %1055 = vmatpush1.bf16.msra.mxu0 0
        %1056 = vmatprep.mubr.bf16.mxu0 0
        %1057 = vmatmul.mubr.bf16.gmra.mrb[0].mxu0 %v1019
        %v1058 = vpop.f32.mrb[0].mxu0
        %v1059 = vadd.f32 %v950, %v1058
        %v1060 = vpop.f32.mrb[0].mxu0
        %v1061 = vpop.f32.mrb[0].mxu0
        %v1062 = vadd.f32 %v955, %v1061
        %v1063 = vpop.f32.mrb[0].mxu0
        %1064 = vmatprep.mubr.bf16.mxu0 0
        %1065 = vmatmul.mubr.bf16.gmra.mrb[0].mxu0 %v1022
        %v1066 = vpop.f32.mrb[0].mxu0
        %v1067 = vadd.f32 %v960, %v1066
        %v1068 = vpop.f32.mrb[0].mxu0
        %v1069 = vpop.f32.mrb[0].mxu0
        %v1070 = vadd.f32 %v965, %v1069
        %v1071 = vpop.f32.mrb[0].mxu0
        %1072 = vdwg.mxu0
        %v1073 = vmax.f32 %v1059, 0.0
        %v1074 = vmax.f32 %v1062, 0.0
        %v1075 = vmax.f32 %v1067, 0.0
        %v1076 = vmax.f32 %v1070, 0.0
        %s1077 = scalar_lea.vmem %s6, 16
        %v1078 = vld [vmem:[%s1077] sm:$0xf]
        %v1079 = vld [vmem:[%s1077 + $0x4] sm:$0xf]
        %v1080 = vld [vmem:[%s1077 + $0x8] sm:$0xf]
        %v1081 = vld [vmem:[%s1077 + $0xc] sm:$0xf]
        %v1082 = vpack.c.bf16 %v1074, %v1073
        %v1083 = vpack.c.bf16 %v1076, %v1075
        %s1084 = scalar_lea.vmem %s7, 32
        %v1085 = vld [vmem:[%s1084] sm:$0xff]
        %v1086 = vld [vmem:[%s1084 + $0x8] sm:$0xff]
        %v1087 = vld [vmem:[%s1084 + $0x10] sm:$0xff]
        %v1088 = vld [vmem:[%s1084 + $0x18] sm:$0xff]
        %1090 = vset.pattern.permute.xlu0 0
        %1091 = vperm.xlu0 %1090, %v1085
        %v1092 = vpop.permute.xlu0 %1091
        %1095 = vset.pattern.permute.xlu0 0
        %1096 = vperm.xlu0 %1095, %v1086
        %v1097 = vpop.permute.xlu0 %1096
        %1100 = vset.pattern.permute.xlu0 0
        %1101 = vperm.xlu0 %1100, %v1087
        %v1102 = vpop.permute.xlu0 %1101
        %1105 = vset.pattern.permute.xlu0 0
        %1106 = vperm.xlu0 %1105, %v1088
        %v1107 = vpop.permute.xlu0 %1106
        %v1113 = vunpack.c.l.b16 %v1078
        %v1114 = vunpack.c.l.b16 %v1079
        %v1115 = vunpack.c.l.b16 %v1080
        %v1116 = vunpack.c.l.b16 %v1081
        %v1117 = vpack.c.b16 %v1114, %v1113
        %v1118 = vpack.c.b16 %v1116, %v1115
        %v1120 = vsel %vm790, %v1117, 0
        %v1123 = vsel %vm790, %v1118, 0
        %1125 = vmatprep.subr.bf16.mxu0 0
        %1126 = vmatpush1.bf16.msra.mxu0 %v1082
        %1127 = vmatprep.subr.bf16.mxu0 0
        %1128 = vmatpush1.bf16.msra.mxu0 %v1083
        %1129 = vmatprep.subr.bf16.mxu0 0
        %1130 = vmatpush1.bf16.msra.mxu0 0
        %1131 = vmatprep.subr.bf16.mxu0 0
        %1132 = vmatpush1.bf16.msra.mxu0 0
        %1133 = vmatprep.subr.bf16.mxu0 0
        %1134 = vmatpush1.bf16.msra.mxu0 0
        %1135 = vmatprep.subr.bf16.mxu0 0
        %1136 = vmatpush1.bf16.msra.mxu0 0
        %1137 = vmatprep.subr.bf16.mxu0 0
        %1138 = vmatpush1.bf16.msra.mxu0 0
        %1139 = vmatprep.subr.bf16.mxu0 0
        %1140 = vmatpush1.bf16.msra.mxu0 0
        %1141 = vmatprep.subr.bf16.mxu0 0
        %1142 = vmatpush1.bf16.msra.mxu0 0
        %1143 = vmatprep.subr.bf16.mxu0 0
        %1144 = vmatpush1.bf16.msra.mxu0 0
        %1145 = vmatprep.subr.bf16.mxu0 0
        %1146 = vmatpush1.bf16.msra.mxu0 0
        %1147 = vmatprep.subr.bf16.mxu0 0
        %1148 = vmatpush1.bf16.msra.mxu0 0
        %1149 = vmatprep.subr.bf16.mxu0 0
        %1150 = vmatpush1.bf16.msra.mxu0 0
        %1151 = vmatprep.subr.bf16.mxu0 0
        %1152 = vmatpush1.bf16.msra.mxu0 0
        %1153 = vmatprep.subr.bf16.mxu0 0
        %1154 = vmatpush1.bf16.msra.mxu0 0
        %1155 = vmatprep.subr.bf16.mxu0 0
        %1156 = vmatpush1.bf16.msra.mxu0 0
        %1157 = vmatprep.mubr.bf16.mxu0 0
        %1158 = vmatmul.mubr.bf16.gmra.mrb[0].mxu0 %v1120
        %v1159 = vpop.f32.mrb[0].mxu0
        %v1160 = vadd.f32 %v1092, %v1159
        %v1161 = vpop.f32.mrb[0].mxu0
        %v1162 = vpop.f32.mrb[0].mxu0
        %v1163 = vadd.f32 %v1097, %v1162
        %v1164 = vpop.f32.mrb[0].mxu0
        %1165 = vmatprep.mubr.bf16.mxu0 0
        %1166 = vmatmul.mubr.bf16.gmra.mrb[0].mxu0 %v1123
        %v1167 = vpop.f32.mrb[0].mxu0
        %v1168 = vadd.f32 %v1102, %v1167
        %v1169 = vpop.f32.mrb[0].mxu0
        %v1170 = vpop.f32.mrb[0].mxu0
        %v1171 = vadd.f32 %v1107, %v1170
        %v1172 = vpop.f32.mrb[0].mxu0
        %1173 = vdwg.mxu0
        %v1174 = vadd.f32 %v850, %v1160
        %v1175 = vadd.f32 %v851, %v1163
        %v1176 = vadd.f32 %v852, %v1168
        %v1177 = vadd.f32 %v853, %v1171
        %v1178 = vmul.f32 %v1174, %v420
        %v1179 = vmul.f32 %v1175, %v420
        %v1180 = vmul.f32 %v1176, %v420
        %v1181 = vmul.f32 %v1177, %v420
        %1182 = vst [vmem:[#allocation2 + $0x8] sm:$0xff] %v1178
        %1183 = vst [vmem:[#allocation2 + $0x20] sm:$0xff] %v1179
        %1184 = vst [vmem:[#allocation2 + $0x38] sm:$0xff] %v1180
        %1185 = vst [vmem:[#allocation2 + $0x50] sm:$0xff] %v1181
        %v1186 = vld [vmem:[#allocation2] sm:$0xff]
        %v1187 = vld [vmem:[#allocation2 + $0x8] sm:$0xff]
        %v1188 = vld [vmem:[#allocation2 + $0x18] sm:$0xff]
        %v1189 = vld [vmem:[#allocation2 + $0x20] sm:$0xff]
        %v1190 = vld [vmem:[#allocation2 + $0x30] sm:$0xff]
        %v1191 = vld [vmem:[#allocation2 + $0x38] sm:$0xff]
        %v1192 = vld [vmem:[#allocation2 + $0x48] sm:$0xff]
        %v1193 = vld [vmem:[#allocation2 + $0x50] sm:$0xff]
        %v1194 = vld [vmem:[#allocation2 + $0x8] sm:$0xff]
        %v1195 = vld [vmem:[#allocation2 + $0x10] sm:$0xff]
        %v1196 = vld [vmem:[#allocation2 + $0x20] sm:$0xff]
        %v1197 = vld [vmem:[#allocation2 + $0x28] sm:$0xff]
        %v1198 = vld [vmem:[#allocation2 + $0x38] sm:$0xff]
        %v1199 = vld [vmem:[#allocation2 + $0x40] sm:$0xff]
        %v1200 = vld [vmem:[#allocation2 + $0x50] sm:$0xff]
        %v1201 = vld [vmem:[#allocation2 + $0x58] sm:$0xff]
        %1206 = vrot.lane.b32.xlu0 %v1187, 124
        %v1207 = vpop.permute.xlu0 %1206
        %1208 = vrot.lane.b32.xlu0 %v1189, 124
        %v1209 = vpop.permute.xlu0 %1208
        %1210 = vrot.lane.b32.xlu0 %v1191, 124
        %v1211 = vpop.permute.xlu0 %1210
        %1212 = vrot.lane.b32.xlu0 %v1193, 124
        %v1213 = vpop.permute.xlu0 %1212
        %1226 = vrot.lane.b32.xlu0 %v1194, 120
        %v1227 = vpop.permute.xlu0 %1226
        %1228 = vrot.lane.b32.xlu0 %v1195, 120
        %v1229 = vpop.permute.xlu0 %1228
        %1230 = vrot.lane.b32.xlu0 %v1196, 120
        %v1231 = vpop.permute.xlu0 %1230
        %1232 = vrot.lane.b32.xlu0 %v1197, 120
        %v1233 = vpop.permute.xlu0 %1232
        %1234 = vrot.lane.b32.xlu0 %v1198, 120
        %v1235 = vpop.permute.xlu0 %1234
        %1236 = vrot.lane.b32.xlu0 %v1199, 120
        %v1237 = vpop.permute.xlu0 %1236
        %1238 = vrot.lane.b32.xlu0 %v1200, 120
        %v1239 = vpop.permute.xlu0 %1238
        %1240 = vrot.lane.b32.xlu0 %v1201, 120
        %v1241 = vpop.permute.xlu0 %1240
        %vm1242 = vcmask 982016
        %v1243 = vsel %vm1242, %v1227, %v1229
        %v1244 = vsel %vm1242, %v1231, %v1233
        %v1245 = vsel %vm1242, %v1235, %v1237
        %v1246 = vsel %vm1242, %v1239, %v1241
        %s1255 = scalar_lea.vmem %s4, 32
        %v1256 = vld [vmem:[%s1255] sm:$0xf]
        %v1257 = vld [vmem:[%s1255 + $0x4] sm:$0xf]
        %v1258 = vld [vmem:[%s1255 + $0x8] sm:$0xf]
        %v1259 = vld [vmem:[%s1255 + $0xc] sm:$0xf]
        %v1260 = vpack.c.bf16 %v1188, %v1186
        %v1261 = vpack.c.bf16 %v1189, %v1187
        %v1262 = vpack.c.bf16 %v1192, %v1190
        %v1263 = vpack.c.bf16 %v1193, %v1191
        %v1264 = vpack.c.bf16 %v1209, %v1207
        %v1265 = vpack.c.bf16 %v1213, %v1211
        %v1266 = vpack.c.bf16 %v1231, %v1227
        %v1267 = vpack.c.bf16 %v1244, %v1243
        %v1268 = vpack.c.bf16 %v1239, %v1235
        %v1269 = vpack.c.bf16 %v1246, %v1245
        %s1270 = scalar_lea.vmem %s5, 64
        %v1271 = vld [vmem:[%s1270] sm:$0xff]
        %v1272 = vld [vmem:[%s1270 + $0x8] sm:$0xff]
        %v1273 = vld [vmem:[%s1270 + $0x10] sm:$0xff]
        %v1274 = vld [vmem:[%s1270 + $0x18] sm:$0xff]
        %1276 = vset.pattern.permute.xlu0 0
        %1277 = vperm.xlu0 %1276, %v1271
        %v1278 = vpop.permute.xlu0 %1277
        %1281 = vset.pattern.permute.xlu0 0
        %1282 = vperm.xlu0 %1281, %v1272
        %v1283 = vpop.permute.xlu0 %1282
        %1286 = vset.pattern.permute.xlu0 0
        %1287 = vperm.xlu0 %1286, %v1273
        %v1288 = vpop.permute.xlu0 %1287
        %1291 = vset.pattern.permute.xlu0 0
        %1292 = vperm.xlu0 %1291, %v1274
        %v1293 = vpop.permute.xlu0 %1292
        %v1299 = vunpack.c.l.b16 %v1256
        %v1300 = vunpack.c.l.b16 %v1257
        %v1301 = vunpack.c.l.b16 %v1258
        %v1302 = vunpack.c.l.b16 %v1259
        %v1303 = vpack.c.b16 %v1300, %v1299
        %v1304 = vpack.c.b16 %v1302, %v1301
        %1315 = vrot.lane.b32.xlu0 %v1260, 4
        %v1316 = vpop.permute.xlu0 %1315
        %1317 = vrot.lane.b32.xlu0 %v1261, 4
        %v1318 = vpop.permute.xlu0 %1317
        %1319 = vrot.lane.b32.xlu0 %v1262, 4
        %v1320 = vpop.permute.xlu0 %1319
        %1321 = vrot.lane.b32.xlu0 %v1263, 4
        %v1322 = vpop.permute.xlu0 %1321
        %1323 = vrot.lane.b32.xlu0 %v1264, 4
        %v1324 = vpop.permute.xlu0 %1323
        %1325 = vrot.lane.b32.xlu0 %v1265, 4
        %v1326 = vpop.permute.xlu0 %1325
        %1327 = vrot.lane.b32.xlu0 %v1266, 4
        %v1328 = vpop.permute.xlu0 %1327
        %1329 = vrot.lane.b32.xlu0 %v1267, 4
        %v1330 = vpop.permute.xlu0 %1329
        %1331 = vrot.lane.b32.xlu0 %v1268, 4
        %v1332 = vpop.permute.xlu0 %1331
        %1333 = vrot.lane.b32.xlu0 %v1269, 4
        %v1334 = vpop.permute.xlu0 %1333
        %vm1335 = vcmask 31744
        %v1336 = vsel %vm1335, %v1316, %v1318
        %v1337 = vsel %vm1335, %v1320, %v1322
        %v1338 = vsel %vm1335, %v1328, %v1330
        %v1339 = vsel %vm1335, %v1332, %v1334
        %v1347 = vsel %vm690, %v1303, 0
        %v1350 = vsel %vm690, %v1304, 0
        %1352 = vmatprep.subr.bf16.mxu0 0
        %1353 = vmatpush1.bf16.msra.mxu0 %v1336
        %1354 = vmatprep.subr.bf16.mxu0 0
        %1355 = vmatpush1.bf16.msra.mxu0 %v1337
        %1356 = vmatprep.subr.bf16.mxu0 0
        %1357 = vmatpush1.bf16.msra.mxu0 %v1324
        %1358 = vmatprep.subr.bf16.mxu0 0
        %1359 = vmatpush1.bf16.msra.mxu0 %v1326
        %1360 = vmatprep.subr.bf16.mxu0 0
        %1361 = vmatpush1.bf16.msra.mxu0 %v1338
        %1362 = vmatprep.subr.bf16.mxu0 0
        %1363 = vmatpush1.bf16.msra.mxu0 %v1339
        %1364 = vmatprep.subr.bf16.mxu0 0
        %1365 = vmatpush1.bf16.msra.mxu0 0
        %1366 = vmatprep.subr.bf16.mxu0 0
        %1367 = vmatpush1.bf16.msra.mxu0 0
        %1368 = vmatprep.subr.bf16.mxu0 0
        %1369 = vmatpush1.bf16.msra.mxu0 0
        %1370 = vmatprep.subr.bf16.mxu0 0
        %1371 = vmatpush1.bf16.msra.mxu0 0
        %1372 = vmatprep.subr.bf16.mxu0 0
        %1373 = vmatpush1.bf16.msra.mxu0 0
        %1374 = vmatprep.subr.bf16.mxu0 0
        %1375 = vmatpush1.bf16.msra.mxu0 0
        %1376 = vmatprep.subr.bf16.mxu0 0
        %1377 = vmatpush1.bf16.msra.mxu0 0
        %1378 = vmatprep.subr.bf16.mxu0 0
        %1379 = vmatpush1.bf16.msra.mxu0 0
        %1380 = vmatprep.subr.bf16.mxu0 0
        %1381 = vmatpush1.bf16.msra.mxu0 0
        %1382 = vmatprep.subr.bf16.mxu0 0
        %1383 = vmatpush1.bf16.msra.mxu0 0
        %1384 = vmatprep.mubr.bf16.mxu0 0
        %1385 = vmatmul.mubr.bf16.gmra.mrb[0].mxu0 %v1347
        %v1386 = vpop.f32.mrb[0].mxu0
        %v1387 = vadd.f32 %v1278, %v1386
        %v1388 = vpop.f32.mrb[0].mxu0
        %v1389 = vpop.f32.mrb[0].mxu0
        %v1390 = vadd.f32 %v1283, %v1389
        %v1391 = vpop.f32.mrb[0].mxu0
        %1392 = vmatprep.mubr.bf16.mxu0 0
        %1393 = vmatmul.mubr.bf16.gmra.mrb[0].mxu0 %v1350
        %v1394 = vpop.f32.mrb[0].mxu0
        %v1395 = vadd.f32 %v1288, %v1394
        %v1396 = vpop.f32.mrb[0].mxu0
        %v1397 = vpop.f32.mrb[0].mxu0
        %v1398 = vadd.f32 %v1293, %v1397
        %v1399 = vpop.f32.mrb[0].mxu0
        %1400 = vdwg.mxu0
        %v1401 = vmax.f32 %v1387, 0.0
        %v1402 = vmax.f32 %v1390, 0.0
        %v1403 = vmax.f32 %v1395, 0.0
        %v1404 = vmax.f32 %v1398, 0.0
        %s1405 = scalar_lea.vmem %s6, 32
        %v1406 = vld [vmem:[%s1405] sm:$0xf]
        %v1407 = vld [vmem:[%s1405 + $0x4] sm:$0xf]
        %v1408 = vld [vmem:[%s1405 + $0x8] sm:$0xf]
        %v1409 = vld [vmem:[%s1405 + $0xc] sm:$0xf]
        %v1410 = vpack.c.bf16 %v1402, %v1401
        %v1411 = vpack.c.bf16 %v1404, %v1403
        %s1412 = scalar_lea.vmem %s7, 64
        %v1413 = vld [vmem:[%s1412] sm:$0xff]
        %v1414 = vld [vmem:[%s1412 + $0x8] sm:$0xff]
        %v1415 = vld [vmem:[%s1412 + $0x10] sm:$0xff]
        %v1416 = vld [vmem:[%s1412 + $0x18] sm:$0xff]
        %1418 = vset.pattern.permute.xlu0 0
        %1419 = vperm.xlu0 %1418, %v1413
        %v1420 = vpop.permute.xlu0 %1419
        %1423 = vset.pattern.permute.xlu0 0
        %1424 = vperm.xlu0 %1423, %v1414
        %v1425 = vpop.permute.xlu0 %1424
        %1428 = vset.pattern.permute.xlu0 0
        %1429 = vperm.xlu0 %1428, %v1415
        %v1430 = vpop.permute.xlu0 %1429
        %1433 = vset.pattern.permute.xlu0 0
        %1434 = vperm.xlu0 %1433, %v1416
        %v1435 = vpop.permute.xlu0 %1434
        %v1441 = vunpack.c.l.b16 %v1406
        %v1442 = vunpack.c.l.b16 %v1407
        %v1443 = vunpack.c.l.b16 %v1408
        %v1444 = vunpack.c.l.b16 %v1409
        %v1445 = vpack.c.b16 %v1442, %v1441
        %v1446 = vpack.c.b16 %v1444, %v1443
        %v1448 = vsel %vm790, %v1445, 0
        %v1451 = vsel %vm790, %v1446, 0
        %1453 = vmatprep.subr.bf16.mxu0 0
        %1454 = vmatpush1.bf16.msra.mxu0 %v1410
        %1455 = vmatprep.subr.bf16.mxu0 0
        %1456 = vmatpush1.bf16.msra.mxu0 %v1411
        %1457 = vmatprep.subr.bf16.mxu0 0
        %1458 = vmatpush1.bf16.msra.mxu0 0
        %1459 = vmatprep.subr.bf16.mxu0 0
        %1460 = vmatpush1.bf16.msra.mxu0 0
        %1461 = vmatprep.subr.bf16.mxu0 0
        %1462 = vmatpush1.bf16.msra.mxu0 0
        %1463 = vmatprep.subr.bf16.mxu0 0
        %1464 = vmatpush1.bf16.msra.mxu0 0
        %1465 = vmatprep.subr.bf16.mxu0 0
        %1466 = vmatpush1.bf16.msra.mxu0 0
        %1467 = vmatprep.subr.bf16.mxu0 0
        %1468 = vmatpush1.bf16.msra.mxu0 0
        %1469 = vmatprep.subr.bf16.mxu0 0
        %1470 = vmatpush1.bf16.msra.mxu0 0
        %1471 = vmatprep.subr.bf16.mxu0 0
        %1472 = vmatpush1.bf16.msra.mxu0 0
        %1473 = vmatprep.subr.bf16.mxu0 0
        %1474 = vmatpush1.bf16.msra.mxu0 0
        %1475 = vmatprep.subr.bf16.mxu0 0
        %1476 = vmatpush1.bf16.msra.mxu0 0
        %1477 = vmatprep.subr.bf16.mxu0 0
        %1478 = vmatpush1.bf16.msra.mxu0 0
        %1479 = vmatprep.subr.bf16.mxu0 0
        %1480 = vmatpush1.bf16.msra.mxu0 0
        %1481 = vmatprep.subr.bf16.mxu0 0
        %1482 = vmatpush1.bf16.msra.mxu0 0
        %1483 = vmatprep.subr.bf16.mxu0 0
        %1484 = vmatpush1.bf16.msra.mxu0 0
        %1485 = vmatprep.mubr.bf16.mxu0 0
        %1486 = vmatmul.mubr.bf16.gmra.mrb[0].mxu0 %v1448
        %v1487 = vpop.f32.mrb[0].mxu0
        %v1488 = vadd.f32 %v1420, %v1487
        %v1489 = vpop.f32.mrb[0].mxu0
        %v1490 = vpop.f32.mrb[0].mxu0
        %v1491 = vadd.f32 %v1425, %v1490
        %v1492 = vpop.f32.mrb[0].mxu0
        %1493 = vmatprep.mubr.bf16.mxu0 0
        %1494 = vmatmul.mubr.bf16.gmra.mrb[0].mxu0 %v1451
        %v1495 = vpop.f32.mrb[0].mxu0
        %v1496 = vadd.f32 %v1430, %v1495
        %v1497 = vpop.f32.mrb[0].mxu0
        %v1498 = vpop.f32.mrb[0].mxu0
        %v1499 = vadd.f32 %v1435, %v1498
        %v1500 = vpop.f32.mrb[0].mxu0
        %1501 = vdwg.mxu0
        %v1502 = vadd.f32 %v1178, %v1488
        %v1503 = vadd.f32 %v1179, %v1491
        %v1504 = vadd.f32 %v1180, %v1496
        %v1505 = vadd.f32 %v1181, %v1499
        %v1506 = vmul.f32 %v1502, %v420
        %v1507 = vmul.f32 %v1503, %v420
        %v1508 = vmul.f32 %v1504, %v420
        %v1509 = vmul.f32 %v1505, %v420
        %1510 = vst [vmem:[#allocation2 + $0x8] sm:$0xff] %v1506
        %1511 = vst [vmem:[#allocation2 + $0x20] sm:$0xff] %v1507
        %1512 = vst [vmem:[#allocation2 + $0x38] sm:$0xff] %v1508
        %1513 = vst [vmem:[#allocation2 + $0x50] sm:$0xff] %v1509
        %v1514 = vld [vmem:[#allocation2] sm:$0xff]
        %v1515 = vld [vmem:[#allocation2 + $0x8] sm:$0xff]
        %v1516 = vld [vmem:[#allocation2 + $0x18] sm:$0xff]
        %v1517 = vld [vmem:[#allocation2 + $0x20] sm:$0xff]
        %v1518 = vld [vmem:[#allocation2 + $0x30] sm:$0xff]
        %v1519 = vld [vmem:[#allocation2 + $0x38] sm:$0xff]
        %v1520 = vld [vmem:[#allocation2 + $0x48] sm:$0xff]
        %v1521 = vld [vmem:[#allocation2 + $0x50] sm:$0xff]
        %v1522 = vld [vmem:[#allocation2 + $0x8] sm:$0xff]
        %v1523 = vld [vmem:[#allocation2 + $0x10] sm:$0xff]
        %v1524 = vld [vmem:[#allocation2 + $0x20] sm:$0xff]
        %v1525 = vld [vmem:[#allocation2 + $0x28] sm:$0xff]
        %v1526 = vld [vmem:[#allocation2 + $0x38] sm:$0xff]
        %v1527 = vld [vmem:[#allocation2 + $0x40] sm:$0xff]
        %v1528 = vld [vmem:[#allocation2 + $0x50] sm:$0xff]
        %v1529 = vld [vmem:[#allocation2 + $0x58] sm:$0xff]
        %1534 = vrot.lane.b32.xlu0 %v1515, 120
        %v1535 = vpop.permute.xlu0 %1534
        %1536 = vrot.lane.b32.xlu0 %v1517, 120
        %v1537 = vpop.permute.xlu0 %1536
        %1538 = vrot.lane.b32.xlu0 %v1519, 120
        %v1539 = vpop.permute.xlu0 %1538
        %1540 = vrot.lane.b32.xlu0 %v1521, 120
        %v1541 = vpop.permute.xlu0 %1540
        %1554 = vrot.lane.b32.xlu0 %v1522, 112
        %v1555 = vpop.permute.xlu0 %1554
        %1556 = vrot.lane.b32.xlu0 %v1523, 112
        %v1557 = vpop.permute.xlu0 %1556
        %1558 = vrot.lane.b32.xlu0 %v1524, 112
        %v1559 = vpop.permute.xlu0 %1558
        %1560 = vrot.lane.b32.xlu0 %v1525, 112
        %v1561 = vpop.permute.xlu0 %1560
        %1562 = vrot.lane.b32.xlu0 %v1526, 112
        %v1563 = vpop.permute.xlu0 %1562
        %1564 = vrot.lane.b32.xlu0 %v1527, 112
        %v1565 = vpop.permute.xlu0 %1564
        %1566 = vrot.lane.b32.xlu0 %v1528, 112
        %v1567 = vpop.permute.xlu0 %1566
        %1568 = vrot.lane.b32.xlu0 %v1529, 112
        %v1569 = vpop.permute.xlu0 %1568
        %vm1570 = vcmask 916480
        %v1571 = vsel %vm1570, %v1555, %v1557
        %v1572 = vsel %vm1570, %v1559, %v1561
        %v1573 = vsel %vm1570, %v1563, %v1565
        %v1574 = vsel %vm1570, %v1567, %v1569
        %s1583 = scalar_lea.vmem %s4, 48
        %v1584 = vld [vmem:[%s1583] sm:$0xf]
        %v1585 = vld [vmem:[%s1583 + $0x4] sm:$0xf]
        %v1586 = vld [vmem:[%s1583 + $0x8] sm:$0xf]
        %v1587 = vld [vmem:[%s1583 + $0xc] sm:$0xf]
        %v1588 = vpack.c.bf16 %v1516, %v1514
        %v1589 = vpack.c.bf16 %v1517, %v1515
        %v1590 = vpack.c.bf16 %v1520, %v1518
        %v1591 = vpack.c.bf16 %v1521, %v1519
        %v1592 = vpack.c.bf16 %v1537, %v1535
        %v1593 = vpack.c.bf16 %v1541, %v1539
        %v1594 = vpack.c.bf16 %v1559, %v1555
        %v1595 = vpack.c.bf16 %v1572, %v1571
        %v1596 = vpack.c.bf16 %v1567, %v1563
        %v1597 = vpack.c.bf16 %v1574, %v1573
        %s1598 = scalar_lea.vmem %s5, 96
        %v1599 = vld [vmem:[%s1598] sm:$0xff]
        %v1600 = vld [vmem:[%s1598 + $0x8] sm:$0xff]
        %v1601 = vld [vmem:[%s1598 + $0x10] sm:$0xff]
        %v1602 = vld [vmem:[%s1598 + $0x18] sm:$0xff]
        %1604 = vset.pattern.permute.xlu0 0
        %1605 = vperm.xlu0 %1604, %v1599
        %v1606 = vpop.permute.xlu0 %1605
        %1609 = vset.pattern.permute.xlu0 0
        %1610 = vperm.xlu0 %1609, %v1600
        %v1611 = vpop.permute.xlu0 %1610
        %1614 = vset.pattern.permute.xlu0 0
        %1615 = vperm.xlu0 %1614, %v1601
        %v1616 = vpop.permute.xlu0 %1615
        %1619 = vset.pattern.permute.xlu0 0
        %1620 = vperm.xlu0 %1619, %v1602
        %v1621 = vpop.permute.xlu0 %1620
        %v1627 = vunpack.c.l.b16 %v1584
        %v1628 = vunpack.c.l.b16 %v1585
        %v1629 = vunpack.c.l.b16 %v1586
        %v1630 = vunpack.c.l.b16 %v1587
        %v1631 = vpack.c.b16 %v1628, %v1627
        %v1632 = vpack.c.b16 %v1630, %v1629
        %1643 = vrot.lane.b32.xlu0 %v1588, 8
        %v1644 = vpop.permute.xlu0 %1643
        %1645 = vrot.lane.b32.xlu0 %v1589, 8
        %v1646 = vpop.permute.xlu0 %1645
        %1647 = vrot.lane.b32.xlu0 %v1590, 8
        %v1648 = vpop.permute.xlu0 %1647
        %1649 = vrot.lane.b32.xlu0 %v1591, 8
        %v1650 = vpop.permute.xlu0 %1649
        %1651 = vrot.lane.b32.xlu0 %v1592, 8
        %v1652 = vpop.permute.xlu0 %1651
        %1653 = vrot.lane.b32.xlu0 %v1593, 8
        %v1654 = vpop.permute.xlu0 %1653
        %1655 = vrot.lane.b32.xlu0 %v1594, 8
        %v1656 = vpop.permute.xlu0 %1655
        %1657 = vrot.lane.b32.xlu0 %v1595, 8
        %v1658 = vpop.permute.xlu0 %1657
        %1659 = vrot.lane.b32.xlu0 %v1596, 8
        %v1660 = vpop.permute.xlu0 %1659
        %1661 = vrot.lane.b32.xlu0 %v1597, 8
        %v1662 = vpop.permute.xlu0 %1661
        %vm1663 = vcmask 64512
        %v1664 = vsel %vm1663, %v1644, %v1646
        %v1665 = vsel %vm1663, %v1648, %v1650
        %v1666 = vsel %vm1663, %v1656, %v1658
        %v1667 = vsel %vm1663, %v1660, %v1662
        %v1675 = vsel %vm690, %v1631, 0
        %v1678 = vsel %vm690, %v1632, 0
        %1680 = vmatprep.subr.bf16.mxu0 0
        %1681 = vmatpush1.bf16.msra.mxu0 %v1664
        %1682 = vmatprep.subr.bf16.mxu0 0
        %1683 = vmatpush1.bf16.msra.mxu0 %v1665
        %1684 = vmatprep.subr.bf16.mxu0 0
        %1685 = vmatpush1.bf16.msra.mxu0 %v1652
        %1686 = vmatprep.subr.bf16.mxu0 0
        %1687 = vmatpush1.bf16.msra.mxu0 %v1654
        %1688 = vmatprep.subr.bf16.mxu0 0
        %1689 = vmatpush1.bf16.msra.mxu0 %v1666
        %1690 = vmatprep.subr.bf16.mxu0 0
        %1691 = vmatpush1.bf16.msra.mxu0 %v1667
        %1692 = vmatprep.subr.bf16.mxu0 0
        %1693 = vmatpush1.bf16.msra.mxu0 0
        %1694 = vmatprep.subr.bf16.mxu0 0
        %1695 = vmatpush1.bf16.msra.mxu0 0
        %1696 = vmatprep.subr.bf16.mxu0 0
        %1697 = vmatpush1.bf16.msra.mxu0 0
        %1698 = vmatprep.subr.bf16.mxu0 0
        %1699 = vmatpush1.bf16.msra.mxu0 0
        %1700 = vmatprep.subr.bf16.mxu0 0
        %1701 = vmatpush1.bf16.msra.mxu0 0
        %1702 = vmatprep.subr.bf16.mxu0 0
        %1703 = vmatpush1.bf16.msra.mxu0 0
        %1704 = vmatprep.subr.bf16.mxu0 0
        %1705 = vmatpush1.bf16.msra.mxu0 0
        %1706 = vmatprep.subr.bf16.mxu0 0
        %1707 = vmatpush1.bf16.msra.mxu0 0
        %1708 = vmatprep.subr.bf16.mxu0 0
        %1709 = vmatpush1.bf16.msra.mxu0 0
        %1710 = vmatprep.subr.bf16.mxu0 0
        %1711 = vmatpush1.bf16.msra.mxu0 0
        %1712 = vmatprep.mubr.bf16.mxu0 0
        %1713 = vmatmul.mubr.bf16.gmra.mrb[0].mxu0 %v1675
        %v1714 = vpop.f32.mrb[0].mxu0
        %v1715 = vadd.f32 %v1606, %v1714
        %v1716 = vpop.f32.mrb[0].mxu0
        %v1717 = vpop.f32.mrb[0].mxu0
        %v1718 = vadd.f32 %v1611, %v1717
        %v1719 = vpop.f32.mrb[0].mxu0
        %1720 = vmatprep.mubr.bf16.mxu0 0
        %1721 = vmatmul.mubr.bf16.gmra.mrb[0].mxu0 %v1678
        %v1722 = vpop.f32.mrb[0].mxu0
        %v1723 = vadd.f32 %v1616, %v1722
        %v1724 = vpop.f32.mrb[0].mxu0
        %v1725 = vpop.f32.mrb[0].mxu0
        %v1726 = vadd.f32 %v1621, %v1725
        %v1727 = vpop.f32.mrb[0].mxu0
        %1728 = vdwg.mxu0
        %v1729 = vmax.f32 %v1715, 0.0
        %v1730 = vmax.f32 %v1718, 0.0
        %v1731 = vmax.f32 %v1723, 0.0
        %v1732 = vmax.f32 %v1726, 0.0
        %s1733 = scalar_lea.vmem %s6, 48
        %v1734 = vld [vmem:[%s1733] sm:$0xf]
        %v1735 = vld [vmem:[%s1733 + $0x4] sm:$0xf]
        %v1736 = vld [vmem:[%s1733 + $0x8] sm:$0xf]
        %v1737 = vld [vmem:[%s1733 + $0xc] sm:$0xf]
        %v1738 = vpack.c.bf16 %v1730, %v1729
        %v1739 = vpack.c.bf16 %v1732, %v1731
        %s1740 = scalar_lea.vmem %s7, 96
        %v1741 = vld [vmem:[%s1740] sm:$0xff]
        %v1742 = vld [vmem:[%s1740 + $0x8] sm:$0xff]
        %v1743 = vld [vmem:[%s1740 + $0x10] sm:$0xff]
        %v1744 = vld [vmem:[%s1740 + $0x18] sm:$0xff]
        %1746 = vset.pattern.permute.xlu0 0
        %1747 = vperm.xlu0 %1746, %v1741
        %v1748 = vpop.permute.xlu0 %1747
        %1751 = vset.pattern.permute.xlu0 0
        %1752 = vperm.xlu0 %1751, %v1742
        %v1753 = vpop.permute.xlu0 %1752
        %1756 = vset.pattern.permute.xlu0 0
        %1757 = vperm.xlu0 %1756, %v1743
        %v1758 = vpop.permute.xlu0 %1757
        %1761 = vset.pattern.permute.xlu0 0
        %1762 = vperm.xlu0 %1761, %v1744
        %v1763 = vpop.permute.xlu0 %1762
        %v1769 = vunpack.c.l.b16 %v1734
        %v1770 = vunpack.c.l.b16 %v1735
        %v1771 = vunpack.c.l.b16 %v1736
        %v1772 = vunpack.c.l.b16 %v1737
        %v1773 = vpack.c.b16 %v1770, %v1769
        %v1774 = vpack.c.b16 %v1772, %v1771
        %v1776 = vsel %vm790, %v1773, 0
        %v1779 = vsel %vm790, %v1774, 0
        %1781 = vmatprep.subr.bf16.mxu0 0
        %1782 = vmatpush1.bf16.msra.mxu0 %v1738
        %1783 = vmatprep.subr.bf16.mxu0 0
        %1784 = vmatpush1.bf16.msra.mxu0 %v1739
        %1785 = vmatprep.subr.bf16.mxu0 0
        %1786 = vmatpush1.bf16.msra.mxu0 0
        %1787 = vmatprep.subr.bf16.mxu0 0
        %1788 = vmatpush1.bf16.msra.mxu0 0
        %1789 = vmatprep.subr.bf16.mxu0 0
        %1790 = vmatpush1.bf16.msra.mxu0 0
        %1791 = vmatprep.subr.bf16.mxu0 0
        %1792 = vmatpush1.bf16.msra.mxu0 0
        %1793 = vmatprep.subr.bf16.mxu0 0
        %1794 = vmatpush1.bf16.msra.mxu0 0
        %1795 = vmatprep.subr.bf16.mxu0 0
        %1796 = vmatpush1.bf16.msra.mxu0 0
        %1797 = vmatprep.subr.bf16.mxu0 0
        %1798 = vmatpush1.bf16.msra.mxu0 0
        %1799 = vmatprep.subr.bf16.mxu0 0
        %1800 = vmatpush1.bf16.msra.mxu0 0
        %1801 = vmatprep.subr.bf16.mxu0 0
        %1802 = vmatpush1.bf16.msra.mxu0 0
        %1803 = vmatprep.subr.bf16.mxu0 0
        %1804 = vmatpush1.bf16.msra.mxu0 0
        %1805 = vmatprep.subr.bf16.mxu0 0
        %1806 = vmatpush1.bf16.msra.mxu0 0
        %1807 = vmatprep.subr.bf16.mxu0 0
        %1808 = vmatpush1.bf16.msra.mxu0 0
        %1809 = vmatprep.subr.bf16.mxu0 0
        %1810 = vmatpush1.bf16.msra.mxu0 0
        %1811 = vmatprep.subr.bf16.mxu0 0
        %1812 = vmatpush1.bf16.msra.mxu0 0
        %1813 = vmatprep.mubr.bf16.mxu0 0
        %1814 = vmatmul.mubr.bf16.gmra.mrb[0].mxu0 %v1776
        %v1815 = vpop.f32.mrb[0].mxu0
        %v1816 = vadd.f32 %v1748, %v1815
        %v1817 = vpop.f32.mrb[0].mxu0
        %v1818 = vpop.f32.mrb[0].mxu0
        %v1819 = vadd.f32 %v1753, %v1818
        %v1820 = vpop.f32.mrb[0].mxu0
        %1821 = vmatprep.mubr.bf16.mxu0 0
        %1822 = vmatmul.mubr.bf16.gmra.mrb[0].mxu0 %v1779
        %v1823 = vpop.f32.mrb[0].mxu0
        %v1824 = vadd.f32 %v1758, %v1823
        %v1825 = vpop.f32.mrb[0].mxu0
        %v1826 = vpop.f32.mrb[0].mxu0
        %v1827 = vadd.f32 %v1763, %v1826
        %v1828 = vpop.f32.mrb[0].mxu0
        %1829 = vdwg.mxu0
        %v1830 = vadd.f32 %v1506, %v1816
        %v1831 = vadd.f32 %v1507, %v1819
        %v1832 = vadd.f32 %v1508, %v1824
        %v1833 = vadd.f32 %v1509, %v1827
        %v1834 = vmul.f32 %v1830, %v420
        %v1835 = vmul.f32 %v1831, %v420
        %v1836 = vmul.f32 %v1832, %v420
        %v1837 = vmul.f32 %v1833, %v420
        %v1838 = vld [vmem:[%s8] sm:$0xf]
        %v1839 = vpack.c.bf16 %v1835, %v1834
        %v1840 = vpack.c.bf16 %v1837, %v1836
        %v1841 = vld [vmem:[%s9] sm:$0xff]
        %1843 = vset.pattern.permute.xlu0 0
        %1844 = vperm.xlu0 %1843, %v1841
        %v1845 = vpop.permute.xlu0 %1844
        %v1848 = vsel %vm790, %v1838, 0
        %1850 = vmatprep.subr.bf16.mxu0 0
        %1851 = vmatpush1.bf16.msra.mxu0 %v1839
        %1852 = vmatprep.subr.bf16.mxu0 0
        %1853 = vmatpush1.bf16.msra.mxu0 %v1840
        %1854 = vmatprep.subr.bf16.mxu0 0
        %1855 = vmatpush1.bf16.msra.mxu0 0
        %1856 = vmatprep.subr.bf16.mxu0 0
        %1857 = vmatpush1.bf16.msra.mxu0 0
        %1858 = vmatprep.subr.bf16.mxu0 0
        %1859 = vmatpush1.bf16.msra.mxu0 0
        %1860 = vmatprep.subr.bf16.mxu0 0
        %1861 = vmatpush1.bf16.msra.mxu0 0
        %1862 = vmatprep.subr.bf16.mxu0 0
        %1863 = vmatpush1.bf16.msra.mxu0 0
        %1864 = vmatprep.subr.bf16.mxu0 0
        %1865 = vmatpush1.bf16.msra.mxu0 0
        %1866 = vmatprep.subr.bf16.mxu0 0
        %1867 = vmatpush1.bf16.msra.mxu0 0
        %1868 = vmatprep.subr.bf16.mxu0 0
        %1869 = vmatpush1.bf16.msra.mxu0 0
        %1870 = vmatprep.subr.bf16.mxu0 0
        %1871 = vmatpush1.bf16.msra.mxu0 0
        %1872 = vmatprep.subr.bf16.mxu0 0
        %1873 = vmatpush1.bf16.msra.mxu0 0
        %1874 = vmatprep.subr.bf16.mxu0 0
        %1875 = vmatpush1.bf16.msra.mxu0 0
        %1876 = vmatprep.subr.bf16.mxu0 0
        %1877 = vmatpush1.bf16.msra.mxu0 0
        %1878 = vmatprep.subr.bf16.mxu0 0
        %1879 = vmatpush1.bf16.msra.mxu0 0
        %1880 = vmatprep.subr.bf16.mxu0 0
        %1881 = vmatpush1.bf16.msra.mxu0 0
        %1882 = vmatprep.mubr.bf16.mxu0 0
        %1883 = vmatmul.mubr.bf16.gmra.mrb[0].mxu0 %v1848
        %v1884 = vpop.f32.mrb[0].mxu0
        %v1885 = vadd.f32 %v1845, %v1884
        %v1886 = vpop.f32.mrb[0].mxu0
        %v1887 = vpop.f32.mrb[0].mxu0
        %v1888 = vpop.f32.mrb[0].mxu0
        %1889 = vdwg.mxu0
        %1890 = vst [vmem:[%s396] sm:$0xff] %v1834
        %1891 = vst [vmem:[%s396 + $0x8] sm:$0xff] %v1835
        %1892 = vst [vmem:[%s396 + $0x10] sm:$0xff] %v1836
        %1893 = vst [vmem:[%s396 + $0x18] sm:$0xff] %v1837
        %v1894 = vmul.f32 %v1885, %v420
        %1895 = vst [vmem:[%s403] sm:$0xff] %v1894
        %s1896 = sand.u32 %s257, 1
        %s1897 = scalar_lea.sflag [#allocation4], %s1896
        %s1898 = sand.u32 %s257, 1
        %s1899 = smul.addr %s1898, 32
        %s1900 = scalar_lea.vmem [#allocation3], %s1899
        %s1901 = sand.u32 %s283, 1
        %s1902 = scalar_lea.sflag [#allocation6], %s1901
        %s1903 = sand.u32 %s283, 1
        %s1904 = smul.addr %s1903, 8
        %s1905 = scalar_lea.vmem [#allocation5], %s1904
        // Predicated region
        $region61: #{tpu_custom_call.1} parent=59 // pred_check
          %p1906 = pneg %p267
        $region62: #{tpu_custom_call.1} parent=59 // pred_check_branch
          %1908 = sbr.rel (%p1906) target = $region64
        $region63: #{tpu_custom_call.1} parent=59 // pred_region
          %s1910 = ssub.s32 512, 512
          %1911 = vsyncadd %s1897, %s1910
          %s1912 = smul.addr %s29, 4
          %s1913 = smul.addr %s1912, 128
          %s1914 = scalar_lea.hbm %s10, %s1913
          %s1915 = sshll.u32 %s1900, 4
          %s1916 = int_to_ptr.vmem [resolvable:$true] %s1915
          %1921 = dma.vmem_to_hbm [thread:$0]  %s1916, 512, %s1914, %s1897, 128, 128, 8
        $region64: #{tpu_custom_call.1} parent=59 // pred_fallthru
          _
        // Predicated region
        $region65: #{tpu_custom_call.1} parent=59 // pred_check
          %p1922 = pneg %p293
        $region66: #{tpu_custom_call.1} parent=59 // pred_check_branch
          %1924 = sbr.rel (%p1922) target = $region68
        $region67: #{tpu_custom_call.1} parent=59 // pred_region
          %s1926 = ssub.s32 128, 128
          %1927 = vsyncadd %s1902, %s1926
          %s1928 = smul.addr %s29, 128
          %s1929 = scalar_lea.hbm %s11, %s1928
          %s1931 = sshll.u32 %s1905, 4
          %s1932 = int_to_ptr.vmem [resolvable:$true] %s1931
          %1934 = dma.vmem_to_hbm [thread:$0]  %s1932, 128, %s1929, %s1902
        $region68: #{tpu_custom_call.1} parent=59 // pred_fallthru
          _
      $region60: #{tpu_custom_call.1} parent=5 // pred_fallthru
        _
      %p1935 = scmp.le.s32.totalorder 2, %s24
      // Predicated region
      $region69: #{tpu_custom_call.1} parent=5 // pred_check
        %p1936 = pneg %p1935
      $region70: #{tpu_custom_call.1} parent=5 // pred_check_branch
        %1938 = sbr.rel (%p1936) target = $region72
      $region71: #{tpu_custom_call.1} parent=5 // pred_region
        %s1939 = ssub.s32 %s24, 2
        // Predicated region
        $region73: #{tpu_custom_call.1} parent=71 // pred_check
          %p1940 = pneg %p273
        $region74: #{tpu_custom_call.1} parent=71 // pred_check_branch
          %1942 = sbr.rel (%p1940) target = $region76
        $region75: #{tpu_custom_call.1} parent=71 // pred_region
          %s1943 = sand.u32 %s258, 1
          %s1944 = scalar_lea.sflag [#allocation4], %s1943
          %s1945 = sand.u32 %s258, 1
          %s1946 = smul.addr %s1945, 32
          %s1947 = scalar_lea.vmem [#allocation3], %s1946
          %1948 = dma.done %s1944, 512
        $region76: #{tpu_custom_call.1} parent=71 // pred_fallthru
          _
        // Predicated region
        $region77: #{tpu_custom_call.1} parent=71 // pred_check
          %p1949 = pneg %p299
        $region78: #{tpu_custom_call.1} parent=71 // pred_check_branch
          %1951 = sbr.rel (%p1949) target = $region80
        $region79: #{tpu_custom_call.1} parent=71 // pred_region
          %s1952 = sand.u32 %s284, 1
          %s1953 = scalar_lea.sflag [#allocation6], %s1952
          %s1954 = sand.u32 %s284, 1
          %s1955 = smul.addr %s1954, 8
          %s1956 = scalar_lea.vmem [#allocation5], %s1955
          %1957 = dma.done %s1953, 128
        $region80: #{tpu_custom_call.1} parent=71 // pred_fallthru
          _
      $region72: #{tpu_custom_call.1} parent=5 // pred_fallthru
        _
    $region6: #{tpu_custom_call.1} parent=1 // loop_footer
      %s28 = sadd.s32 1, %s24
    $region7: #{tpu_custom_call.1} parent=1 // loop_footer_branch
      %23 = sbr.rel target = $region3
    $region8: #{tpu_custom_call.1} parent=1 // loop_exit
      _
    %1958 = vsyncpa [#allocation4], 1
    %s1959 = scalar_lea.sflag [#allocation4], 1
    %1960 = vsyncpa %s1959, 1
    %1961 = vsyncpa [#allocation6], 1
    %s1962 = scalar_lea.sflag [#allocation6], 1
    %1963 = vsyncpa %s1962, 1

</llo_original>
